<compile_context>
chip_gen: v7x
topology: tpu7x:2x2x1
jax: 0.10.0
libtpu: 0.0.40
codegen_flags: <defaults>
</compile_context>

<pallas_src>
import functools

import jax
import jax.numpy as jnp
from jax.experimental import pallas as pl
from jax.experimental.pallas import tpu as pltpu


_VMEM_LIMIT = 48 * 1024 * 1024    # fits v5e/v6e (128 MiB) and v7x (64 MiB) physical VMEM


# ----------------------------------------------------------------------------
# helpers
# ----------------------------------------------------------------------------
def _make_divisible(v, divisor, min_value=None):
    if min_value is None:
        min_value = divisor
    new_v = max(min_value, int(v + divisor / 2) // divisor * divisor)
    if new_v < 0.9 * v:
        new_v += divisor
    return new_v


def _pick_tile(d, cands):
    for c in cands:
        if c <= d and d % c == 0:
            return c
    return d


def _pick_row_tile(ho, wo, c):
    """Largest divisor of `ho` whose f32 working set stays under ~2 MiB."""
    budget = 2 * 1024 * 1024
    cap = max(1, budget // max(1, wo * c * 4))
    for cand in (64, 32, 16, 8, 4, 2, 1):
        if cand <= ho and cand <= cap and ho % cand == 0:
            return cand
    return 1


def _pick_row_tile3(ho, wp, cout):
    """Row tile for the dense conv3x3 kernel (f32 acc <= ~512 KiB, <=8 rows)."""
    budget = 512 * 1024
    for cand in (8, 4, 2, 1):
        if cand <= ho and ho % cand == 0 and cand * wp * cout * 4 <= budget:
            return cand
    return 1


# ----------------------------------------------------------------------------
# Pallas kernel: tiled matmul, fused scale/shift + activation (+ residual add)
# ----------------------------------------------------------------------------
def _mm_kernel(a_ref, b_ref, scale_ref, shift_ref, *rest, act, has_res):
    if has_res:
        res_ref, o_ref, acc_ref = rest
    else:
        res_ref = None
        o_ref, acc_ref = rest
    k = pl.program_id(2)

    @pl.when(k == 0)
    def _():
        acc_ref[...] = jnp.zeros_like(acc_ref)

    acc_ref[...] += jnp.dot(a_ref[...], b_ref[...], preferred_element_type=jnp.float32)

    @pl.when(k == pl.num_programs(2) - 1)
    def _():
        y = acc_ref[...] * scale_ref[...] + shift_ref[...]
        if act == 1:          # ReLU
            y = jnp.maximum(y, 0.0)
        elif act == 2:        # ReLU6
            y = jnp.clip(y, 0.0, 6.0)
        if has_res:
            y = y + res_ref[...].astype(jnp.float32)
        o_ref[...] = y.astype(o_ref.dtype)


def matmul_scale_shift_act(a, b, scale, shift, act, residual=None):
    """(M,K)bf16 @ (K,N)bf16 -> f32 acc -> *scale + shift -> act (+res) -> bf16."""
    M, K = a.shape
    K2, N = b.shape
    assert K == K2
    a = a.astype(jnp.bfloat16)

    TM = _pick_tile(M, (512, 256, 128, 64, 32, 16, 8)) if M % 8 == 0 else M
    TK = _pick_tile(K, (512, 256, 128)) if K % 128 == 0 else K
    TN = _pick_tile(N, (512, 256, 128)) if N % 128 == 0 else N
    grid = (M // TM, N // TN, K // TK)

    has_res = residual is not None
    in_specs = [
        pl.BlockSpec((TM, TK), lambda i, j, k: (i, k)),
        pl.BlockSpec((TK, TN), lambda i, j, k: (k, j)),
        pl.BlockSpec((1, TN), lambda i, j, k: (0, j)),
        pl.BlockSpec((1, TN), lambda i, j, k: (0, j)),
    ]
    args = [a, b, scale, shift]
    if has_res:
        in_specs.append(pl.BlockSpec((TM, TN), lambda i, j, k: (i, j)))
        args.append(residual.astype(jnp.bfloat16))

    cost = pl.CostEstimate(
        flops=2 * M * N * K,
        transcendentals=0,
        bytes_accessed=2 * (M * K + K * N + 2 * M * N))

    return pl.pallas_call(
        functools.partial(_mm_kernel, act=act, has_res=has_res),
        out_shape=jax.ShapeDtypeStruct((M, N), jnp.bfloat16),
        grid_spec=pltpu.PrefetchScalarGridSpec(
            num_scalar_prefetch=0,
            grid=grid,
            in_specs=in_specs,
            out_specs=pl.BlockSpec((TM, TN), lambda i, j, k: (i, j)),
            scratch_shapes=[pltpu.VMEM((TM, TN), jnp.float32)],
        ),
        compiler_params=pltpu.CompilerParams(
            dimension_semantics=("parallel", "parallel", "arbitrary"),
            vmem_limit_bytes=_VMEM_LIMIT),
        cost_estimate=cost,
    )(*args)


# ----------------------------------------------------------------------------
# Pallas kernel: dense 3x3 stride-1 conv + scale/shift + act, no im2col in HBM
# (flattened padded rows, 9 contiguous shifted-window matmuls per row tile)
# ----------------------------------------------------------------------------
def _conv3x3_kernel(x_hbm, w_ref, sc_ref, sh_ref, o_ref, buf, sem, acc_ref,
                    *, tho, wo, wp, n_t, act):
    b = pl.program_id(0)
    rows = (tho + 2) * wp          # flat padded rows per DMA'd tile
    m_rows = tho * wp - 2          # shifted-window matmul M (last valid output row)

    def copy(t, slot):
        src = x_hbm.at[b, pl.ds(t * tho * wp, rows)]
        return pltpu.make_async_copy(src, buf.at[slot], sem.at[slot])

    copy(0, 0).start()             # self-contained priming (megacore-safe)

    def body(t, carry):
        slot = t % 2
        copy(t, slot).wait()

        @pl.when(t + 1 < n_t)
        def _():
            copy(t + 1, 1 - slot).start()

        bslot = buf.at[slot]
        acc_ref[...] = jnp.zeros_like(acc_ref)
        for dy in range(3):
            for dx in range(3):
                a = bslot[pl.ds(dy * wp + dx, m_rows), :]
                acc_ref[...] += jnp.dot(a, w_ref[3 * dy + dx],
                                        preferred_element_type=jnp.float32)
        # epilogue + store row by row (drops the 2 garbage columns per row)
        for r in range(tho):
            y = acc_ref[pl.ds(r * wp, wo), :] * sc_ref[...] + sh_ref[...]
            if act == 1:
                y = jnp.maximum(y, 0.0)
            elif act == 2:
                y = jnp.clip(y, 0.0, 6.0)
            o_ref[0, t * tho + r] = y.astype(o_ref.dtype)
        return carry

    jax.lax.fori_loop(0, n_t, body, 0)


def conv3x3_fused(x, wt, scale, shift, act):
    """x: (B,H,W,Cin) bf16; wt: (9,Cin,Cout) bf16 tap matrices; pad=1, stride=1."""
    B, H, W, Cin = x.shape
    Cout = wt.shape[2]
    xp = jnp.pad(x, ((0, 0), (1, 1), (1, 1), (0, 0)))
    Hp, Wp = H + 2, W + 2
    xf = xp.reshape(B, Hp * Wp, Cin)          # row-major flatten (free)
    Ho, Wo = H, W
    tho = _pick_row_tile3(Ho, Wp, Cout)
    n_t = Ho // tho

    kernel = functools.partial(_conv3x3_kernel, tho=tho, wo=Wo, wp=Wp, n_t=n_t,
                               act=act)
    return pl.pallas_call(
        kernel,
        out_shape=jax.ShapeDtypeStruct((B, Ho, Wo, Cout), jnp.bfloat16),
        grid_spec=pltpu.PrefetchScalarGridSpec(
            num_scalar_prefetch=0,
            grid=(B,),
            in_specs=[
                pl.BlockSpec(memory_space=pl.ANY),              # flat padded act (HBM)
                pl.BlockSpec((9, Cin, Cout), lambda b: (0, 0, 0)),
                pl.BlockSpec((1, Cout), lambda b: (0, 0)),
                pl.BlockSpec((1, Cout), lambda b: (0, 0)),
            ],
            out_specs=pl.BlockSpec((1, Ho, Wo, Cout), lambda b: (b, 0, 0, 0)),
            scratch_shapes=[pltpu.VMEM((2, (tho + 2) * Wp, Cin), jnp.bfloat16),
                            pltpu.SemaphoreType.DMA((2,)),
                            pltpu.VMEM((tho * Wp - 2, Cout), jnp.float32)],
        ),
        compiler_params=pltpu.CompilerParams(
            dimension_semantics=("parallel",),
            vmem_limit_bytes=_VMEM_LIMIT),
    )(xf, wt, scale, shift)


# ----------------------------------------------------------------------------
# Pallas kernel: depthwise 3x3 + BN + ReLU6, halo DMA, megacore-safe
# ----------------------------------------------------------------------------
def _dw_kernel(x_hbm, w_ref, sc_ref, sh_ref, o_ref, buf, sem,
               *, stride, tho, wo, n_t):
    b = pl.program_id(0)

    def copy(t, slot):
        if stride == 1:
            src = x_hbm.at[b, pl.ds(t * tho, tho + 2)]
        else:   # stride 2: 4 parity planes, +1 half-row halo, unit-stride taps
            src = x_hbm.at[b, pl.ds(0, 4), pl.ds(t * tho, tho + 1)]
        return pltpu.make_async_copy(src, buf.at[slot], sem.at[slot])

    copy(0, 0).start()             # self-contained priming (megacore-safe)

    def body(t, carry):
        slot = t % 2
        copy(t, slot).wait()

        @pl.when(t + 1 < n_t)
        def _():
            copy(t + 1, 1 - slot).start()

        blk = buf[slot]            # (tho+2, Wp, C)  or  (4, tho+1, Wh, C)
        acc = None
        for dy in range(3):
            for dx in range(3):
                if stride == 1:
                    tap = blk[dy:dy + tho, dx:dx + wo, :]
                else:
                    p = 2 * (dy % 2) + (dx % 2)
                    tap = blk[p, dy // 2:dy // 2 + tho, dx // 2:dx // 2 + wo, :]
                term = tap * w_ref[3 * dy + dx]          # packed bf16 multiply
                acc = term.astype(jnp.float32) if acc is None else acc + term
        y = acc * sc_ref[...] + sh_ref[...]
        o_ref[0, pl.ds(t * tho, tho)] = jnp.clip(y, 0.0, 6.0).astype(o_ref.dtype)
        return carry

    jax.lax.fori_loop(0, n_t, body, 0)


def dwconv3x3_bn_relu6(x, p):
    """x: NHWC bf16; p: dict(w9 (9,1,C) bf16, scale (1,C), shift (1,C), stride)."""
    B, H, W, C = x.shape
    stride = p['stride']
    xp = jnp.pad(x, ((0, 0), (1, 1), (1, 1), (0, 0)))
    Ho = (H + 2 - 3) // stride + 1
    Wo = (W + 2 - 3) // stride + 1

    if stride == 1:
        src = xp                                              # (B, H+2, W+2, C)
        width = src.shape[2]
    else:
        Hp, Wp = xp.shape[1], xp.shape[2]
        xp2 = jnp.pad(xp, ((0, 0), (0, Hp % 2), (0, Wp % 2), (0, 0)))
        planes = [xp2[:, ry::2, rx::2, :] for ry in (0, 1) for rx in (0, 1)]
        src = jnp.stack(planes, axis=1)                       # (B, 4, Hh, Wh, C)
        width = src.shape[3]

    tho = _pick_row_tile(Ho, Wo, C)
    n_t = Ho // tho
    if stride == 1:
        buf_shape = (2, tho + 2, width, C)
    else:
        buf_shape = (2, 4, tho + 1, width, C)

    kernel = functools.partial(_dw_kernel, stride=stride, tho=tho, wo=Wo, n_t=n_t)
    return pl.pallas_call(
        kernel,
        out_shape=jax.ShapeDtypeStruct((B, Ho, Wo, C), jnp.bfloat16),
        grid_spec=pltpu.PrefetchScalarGridSpec(
            num_scalar_prefetch=0,
            grid=(B,),
            in_specs=[
                pl.BlockSpec(memory_space=pl.ANY),                 # input stays in HBM
                pl.BlockSpec((9, 1, C), lambda b: (0, 0, 0)),      # taps
                pl.BlockSpec((1, C), lambda b: (0, 0)),            # bn scale
                pl.BlockSpec((1, C), lambda b: (0, 0)),            # bn shift
            ],
            out_specs=pl.BlockSpec((1, Ho, Wo, C), lambda b: (b, 0, 0, 0)),
            scratch_shapes=[pltpu.VMEM(buf_shape, jnp.bfloat16),
                            pltpu.SemaphoreType.DMA((2,))],
        ),
        compiler_params=pltpu.CompilerParams(
            dimension_semantics=("parallel",),
            vmem_limit_bytes=_VMEM_LIMIT),
    )(src, p['w9'], p['scale'], p['shift'])


# ----------------------------------------------------------------------------
# conv wrappers (JAX glue + Pallas kernels)
# ----------------------------------------------------------------------------
def _im2col(x, kh, kw, stride, pad):
    B, H, W, C = x.shape
    xp = jnp.pad(x, ((0, 0), (pad, pad), (pad, pad), (0, 0)))
    Ho = (H + 2 * pad - kh) // stride + 1
    Wo = (W + 2 * pad - kw) // stride + 1
    cols = []
    for dy in range(kh):
        for dx in range(kw):
            cols.append(xp[:, dy:dy + (Ho - 1) * stride + 1:stride,
                            dx:dx + (Wo - 1) * stride + 1:stride, :])
    patches = jnp.stack(cols, axis=3)                # (B, Ho, Wo, kh*kw, C)
    return patches.reshape(B * Ho * Wo, kh * kw * C), Ho, Wo


def conv_fused(x, p, stride, pad, act, residual=None):
    """1x1 convs (and the stem) via the fused matmul kernel."""
    B, H, W, Cin = x.shape
    k = p['k']
    if k == 1:
        patches, Ho, Wo = x.reshape(B * H * W, Cin), H, W
    else:
        # TODO(synk): stem (k=3, s=2, Cin=3) still builds a tiny im2col tensor.
        patches, Ho, Wo = _im2col(x, k, k, stride, pad)
    res = residual.reshape(B * Ho * Wo, -1) if residual is not None else None
    y = matmul_scale_shift_act(patches, p['wm'], p['scale'], p['shift'], act,
                               residual=res)
    return y.reshape(B, Ho, Wo, p['wm'].shape[1])


def deconv4x4_s2(x, p):
    """ConvTranspose2d(k=4,s=2,p=1) + BN + ReLU as a 4-parity conv3x3 + depth2space."""
    B, H, W, _ = x.shape
    Cout = p['wt'].shape[2] // 4
    y = conv3x3_fused(x, p['wt'], p['scale'], p['shift'], act=1)  # (B,H,W,4*Cout)
    y = y.reshape(B, H, W, 2, 2, Cout)                            # [..., ry, rx, co]
    # TODO(synk): fuse the depth-to-space interleave into the conv3x3 output stores.
    y = jnp.transpose(y, (0, 1, 3, 2, 4, 5)).reshape(B, 2 * H, 2 * W, Cout)
    return y


# ----------------------------------------------------------------------------
# parameter construction (deterministic, synthetic; pre-folded to kernel layout)
# ----------------------------------------------------------------------------
class _KeyGen:
    def __init__(self, seed):
        self._key = jax.random.PRNGKey(seed)

    def __call__(self):
        self._key, sub = jax.random.split(self._key)
        return sub


def _bn(kg, c):
    gamma = 1.0 + 0.02 * jax.random.normal(kg(), (c,), jnp.float32)
    beta = 0.02 * jax.random.normal(kg(), (c,), jnp.float32)
    mean = jnp.zeros((c,), jnp.float32)   # eval-mode running stats
    var = jnp.ones((c,), jnp.float32)
    scale = gamma / jnp.sqrt(var + 1e-5)
    shift = beta - mean * scale
    return scale, shift


def _conv_bn_params(kg, cout, cin, k, std=0.05, taps=False):
    w = std * jax.random.normal(kg(), (cout, cin, k, k), jnp.float32)
    scale, shift = _bn(kg, cout)
    wt = jnp.transpose(w, (2, 3, 1, 0))                  # (k,k,cin,cout)
    d = dict(scale=scale.reshape(1, -1), shift=shift.reshape(1, -1), k=k)
    if taps:
        d['wt'] = wt.reshape(k * k, cin, cout).astype(jnp.bfloat16)
    else:
        d['wm'] = wt.reshape(k * k * cin, cout).astype(jnp.bfloat16)
    return d


def _dw_params(kg, c, stride, std=0.05):
    w = std * jax.random.normal(kg(), (c, 1, 3, 3), jnp.float32)
    scale, shift = _bn(kg, c)
    w9 = jnp.transpose(w[:, 0], (1, 2, 0)).reshape(9, 1, c).astype(jnp.bfloat16)
    return dict(w9=w9, scale=scale.reshape(1, -1), shift=shift.reshape(1, -1),
                stride=stride)


def _deconv_params(kg, planes, std=0.05):
    # ConvTranspose2d weight, PyTorch layout (Cin, Cout, 4, 4); Cin == Cout.
    w = std * jax.random.normal(kg(), (planes, planes, 4, 4), jnp.float32)
    scale, shift = _bn(kg, planes)
    # output row oy = 2*py + ry uses padded-input rows py+dy with kernel row ky:
    #   ry=0: {dy=0 -> ky=3, dy=1 -> ky=1};  ry=1: {dy=1 -> ky=2, dy=2 -> ky=0}
    kmap = {0: {0: 3, 1: 1}, 1: {1: 2, 2: 0}}
    wm = jnp.zeros((9 * planes, 4 * planes), jnp.float32)
    for ry in (0, 1):
        for rx in (0, 1):
            q = 2 * ry + rx
            for dy, ky in kmap[ry].items():
                for dx, kx in kmap[rx].items():
                    p = 3 * dy + dx
                    wm = wm.at[p * planes:(p + 1) * planes,
                               q * planes:(q + 1) * planes].set(w[:, :, ky, kx])
    wt = wm.reshape(9, planes, 4 * planes).astype(jnp.bfloat16)
    return dict(wt=wt,
                scale=jnp.tile(scale, 4).reshape(1, -1),
                shift=jnp.tile(shift, 4).reshape(1, -1))


def _head_params(kg, heads, head_conv):
    order = list(heads.keys())
    nh = len(order)
    w1s, b1s, blocks2, b2s, splits = [], [], [], [], []
    for h in order:
        classes = heads[h]
        w1 = 0.001 * jax.random.normal(kg(), (head_conv, 64, 3, 3), jnp.float32)
        b1 = jnp.zeros((head_conv,), jnp.float32)
        w2 = 0.001 * jax.random.normal(kg(), (classes, head_conv, 1, 1), jnp.float32)
        b2 = (jnp.full((classes,), -2.19, jnp.float32) if 'hm' in h
              else jnp.zeros((classes,), jnp.float32))
        w1s.append(w1)
        b1s.append(b1)
        blocks2.append(jnp.transpose(w2[:, :, 0, 0], (1, 0)))   # (head_conv, classes)
        b2s.append(b2)
        splits.append(classes)
    # merged 3x3 head conv, tap layout (9, 64, nh*head_conv)
    w1_all = jnp.concatenate(w1s, axis=0)                       # (nh*hc, 64, 3, 3)
    wt1 = jnp.transpose(w1_all, (2, 3, 1, 0)).reshape(9, 64, nh * head_conv)
    wt1 = wt1.astype(jnp.bfloat16)
    shift1 = jnp.concatenate(b1s).reshape(1, -1)
    # merged final 1x1 head conv: block-diagonal, lane-padded to a 128 multiple
    total = sum(splits)
    npad = ((total + 127) // 128) * 128
    wm2 = jnp.zeros((nh * head_conv, npad), jnp.float32)
    off = 0
    for i, blk in enumerate(blocks2):
        wm2 = wm2.at[i * head_conv:(i + 1) * head_conv, off:off + splits[i]].set(blk)
        off += splits[i]
    shift2 = jnp.concatenate(
        b2s + [jnp.zeros((npad - total,), jnp.float32)]).reshape(1, -1)
    return dict(order=order, splits=splits,
                wt1=wt1, scale1=jnp.ones_like(shift1), shift1=shift1,
                wm2=wm2.astype(jnp.bfloat16),
                scale2=jnp.ones((1, npad), jnp.float32), shift2=shift2)


def build_pose_mobilenetv2(kg, heads, head_conv=64, width_mult=1.0, round_nearest=8):
    setting = [[1, 16, 1, 1], [6, 24, 2, 2], [6, 32, 3, 2], [6, 64, 4, 2],
               [6, 96, 3, 1], [6, 160, 3, 2], [6, 320, 1, 1]]
    input_channel = _make_divisible(32 * width_mult, round_nearest)
    last_channel = _make_divisible(1280 * max(1.0, width_mult), round_nearest)

    features = []
    stem = _conv_bn_params(kg, input_channel, 3, 3)
    stem.update(kind='conv', stride=2, pad=1, act=2)            # ConvBNReLU6
    features.append(stem)
    for t, c, n, s in setting:
        output_channel = _make_divisible(c * width_mult, round_nearest)
        for i in range(n):
            stride = s if i == 0 else 1
            hidden = int(round(input_channel * t))
            blk = dict(kind='ir',
                       use_res=(stride == 1 and input_channel == output_channel))
            blk['expand'] = (_conv_bn_params(kg, hidden, input_channel, 1)
                             if t != 1 else None)
            blk['dw'] = _dw_params(kg, hidden, stride)
            blk['project'] = _conv_bn_params(kg, output_channel, hidden, 1)
            features.append(blk)
            input_channel = output_channel
    last = _conv_bn_params(kg, last_channel, input_channel, 1)
    last.update(kind='conv', stride=1, pad=0, act=2)
    features.append(last)

    deconv = []
    inplanes = last_channel
    for planes in [256, 128, 64]:
        c3 = _conv_bn_params(kg, planes, inplanes, 3, std=0.001, taps=True)
        up = _deconv_params(kg, planes)
        deconv.append(dict(conv=c3, up=up))
        inplanes = planes

    head = _head_params(kg, heads, head_conv)
    return dict(features=features, deconv=deconv, head=head)


# ----------------------------------------------------------------------------
# forward
# ----------------------------------------------------------------------------
def pose_mobilenetv2_forward(params, x_nchw):
    x = jnp.transpose(x_nchw, (0, 2, 3, 1)).astype(jnp.bfloat16)   # NCHW -> NHWC

    for layer in params['features']:
        if layer['kind'] == 'conv':
            x = conv_fused(x, layer, layer['stride'], layer['pad'], layer['act'])
        else:                                   # inverted residual
            inp = x
            y = x
            if layer['expand'] is not None:
                y = conv_fused(y, layer['expand'], 1, 0, act=2)
            y = dwconv3x3_bn_relu6(y, layer['dw'])
            # project 1x1 conv + BN, residual add fused into the matmul epilogue
            x = conv_fused(y, layer['project'], 1, 0, act=0,
                           residual=inp if layer['use_res'] else None)

    for stage in params['deconv']:
        c = stage['conv']
        x = conv3x3_fused(x, c['wt'], c['scale'], c['shift'], act=1)  # conv3x3+BN+ReLU
        x = deconv4x4_s2(x, stage['up'])                              # deconv+BN+ReLU

    hp = params['head']
    y = conv3x3_fused(x, hp['wt1'], hp['scale1'], hp['shift1'], act=1)
    B, Hq, Wq, _ = y.shape
    y = matmul_scale_shift_act(y.reshape(B * Hq * Wq, -1), hp['wm2'],
                               hp['scale2'], hp['shift2'], act=0)
    y = y.reshape(B, Hq, Wq, -1)

    outs = []
    off = 0
    for classes in hp['splits']:
        o = y[..., off:off + classes]
        off += classes
        outs.append(jnp.transpose(o, (0, 3, 1, 2)).astype(jnp.float32))  # -> NCHW f32
    return outs


# ----------------------------------------------------------------------------
if __name__ == "__main__":
    heads = {'hm': 2, 'wh': 2, 'reg': 2}
    params = build_pose_mobilenetv2(_KeyGen(1), heads, head_conv=64)

    # input /32 divisible so backbone bottoms out at 1x1 and heads come out at /4
    x = jax.random.normal(jax.random.PRNGKey(0), (2, 3, 32, 32), jnp.float32)

    outs = pose_mobilenetv2_forward(params, x)
    outs = jax.block_until_ready(outs)

    for name, o in zip(params['head']['order'], outs):
        assert o.shape == (2, heads[name], 8, 8), (name, o.shape)
        assert o.dtype == jnp.float32
        assert bool(jnp.all(jnp.isfinite(o)))
    print("KERNEL_OK")
</pallas_src>

<mosaic_0001>
module attributes {stable_mosaic.version = 11 : i64} {
  func.func @_mm_kernel(%arg0: i32, %arg1: i32, %arg2: i32, %arg3: memref<512x27xbf16, #tpu.memory_space<vmem>>, %arg4: memref<27x32xbf16, #tpu.memory_space<vmem>>, %arg5: memref<1x32xf32, #tpu.memory_space<vmem>>, %arg6: memref<1x32xf32, #tpu.memory_space<vmem>>, %arg7: memref<512x32xbf16, #tpu.memory_space<vmem>>, %arg8: memref<512x32xf32, #tpu.memory_space<vmem>>) attributes {dimension_semantics = [#tpu.dimension_semantics<parallel>, #tpu.dimension_semantics<parallel>, #tpu.dimension_semantics<arbitrary>], iteration_bounds = array<i64: 1, 1, 1>, scalar_prefetch = 0 : i64, scratch_operands = 1 : i64, tpu.core_type = #tpu.core_type<tc>, window_params = [{transform_indices = @transform_0, window_bounds = array<i64: 512, 27>}, {transform_indices = @transform_1, window_bounds = array<i64: 27, 32>}, {transform_indices = @transform_2, window_bounds = array<i64: 1, 32>}, {transform_indices = @transform_3, window_bounds = array<i64: 1, 32>}, {transform_indices = @transform_4, window_bounds = array<i64: 512, 32>}]} {
    %c0_i32 = arith.constant 0 : i32
    %0 = arith.cmpi eq, %arg2, %c0_i32 : i32
    %1 = arith.extui %0 : i1 to i32
    %c0_i32_0 = arith.constant 0 : i32
    %2 = arith.cmpi ne, %1, %c0_i32_0 : i32
    scf.if %2 {
      %cst_10 = arith.constant 0.000000e+00 : f32
      %12 = vector.broadcast %cst_10 : f32 to vector<512x32xf32>
      %c0_11 = arith.constant 0 : index
      %c0_12 = arith.constant 0 : index
      %13 = vector.load %arg8[%c0_11, %c0_12] : memref<512x32xf32, #tpu.memory_space<vmem>>, vector<512x32xf32>
      tpu.vector_store %arg8[%c0_11, %c0_12], %12 {strides = array<i32>} : memref<512x32xf32, #tpu.memory_space<vmem>>, vector<512x32xf32>,
    } else {
    }
    %c0 = arith.constant 0 : index
    %c0_1 = arith.constant 0 : index
    %3 = vector.load %arg8[%c0, %c0_1] : memref<512x32xf32, #tpu.memory_space<vmem>>, vector<512x32xf32>
    %c0_2 = arith.constant 0 : index
    %c0_3 = arith.constant 0 : index
    %4 = vector.load %arg3[%c0_2, %c0_3] : memref<512x27xbf16, #tpu.memory_space<vmem>>, vector<512x27xbf16>
    %c0_4 = arith.constant 0 : index
    %c0_5 = arith.constant 0 : index
    %5 = vector.load %arg4[%c0_4, %c0_5] : memref<27x32xbf16, #tpu.memory_space<vmem>>, vector<27x32xbf16>
    %cst = arith.constant dense<0.000000e+00> : vector<512x32xf32>
    %6 = tpu.matmul %4, %5, %cst {dimension_numbers = #tpu.dot_dimension_numbers<[1], [0], [0], [1], [0, 0, 1, 1], [], []>} : vector<512x27xbf16>, vector<27x32xbf16>, vector<512x32xf32> -> vector<512x32xf32>
    %7 = arith.addf %3, %6 : vector<512x32xf32>
    %c0_6 = arith.constant 0 : index
    %c0_7 = arith.constant 0 : index
    %8 = vector.load %arg8[%c0_6, %c0_7] : memref<512x32xf32, #tpu.memory_space<vmem>>, vector<512x32xf32>
    tpu.vector_store %arg8[%c0_6, %c0_7], %7 {strides = array<i32>} : memref<512x32xf32, #tpu.memory_space<vmem>>, vector<512x32xf32>,
    %c0_i32_8 = arith.constant 0 : i32
    %9 = arith.cmpi eq, %arg2, %c0_i32_8 : i32
    %10 = arith.extui %9 : i1 to i32
    %c0_i32_9 = arith.constant 0 : i32
    %11 = arith.cmpi ne, %10, %c0_i32_9 : i32
    scf.if %11 {
      %c0_10 = arith.constant 0 : index
      %c0_11 = arith.constant 0 : index
      %12 = vector.load %arg8[%c0_10, %c0_11] : memref<512x32xf32, #tpu.memory_space<vmem>>, vector<512x32xf32>
      %c0_12 = arith.constant 0 : index
      %c0_13 = arith.constant 0 : index
      %13 = vector.load %arg5[%c0_12, %c0_13] : memref<1x32xf32, #tpu.memory_space<vmem>>, vector<1x32xf32>
      %14 = vector.broadcast %13 : vector<1x32xf32> to vector<512x32xf32>
      %15 = arith.mulf %12, %14 : vector<512x32xf32>
      %c0_14 = arith.constant 0 : index
      %c0_15 = arith.constant 0 : index
      %16 = vector.load %arg6[%c0_14, %c0_15] : memref<1x32xf32, #tpu.memory_space<vmem>>, vector<1x32xf32>
      %17 = vector.broadcast %16 : vector<1x32xf32> to vector<512x32xf32>
      %18 = arith.addf %15, %17 : vector<512x32xf32>
      %cst_16 = arith.constant 0.000000e+00 : f32
      %cst_17 = arith.constant 6.000000e+00 : f32
      %19 = vector.broadcast %cst_16 : f32 to vector<512x32xf32>
      %20 = arith.maximumf %19, %18 : vector<512x32xf32>
      %21 = vector.broadcast %cst_17 : f32 to vector<512x32xf32>
      %22 = arith.minimumf %21, %20 : vector<512x32xf32>
      %23 = arith.truncf %22 : vector<512x32xf32> to vector<512x32xbf16>
      %c0_18 = arith.constant 0 : index
      %c0_19 = arith.constant 0 : index
      %24 = vector.load %arg7[%c0_18, %c0_19] : memref<512x32xbf16, #tpu.memory_space<vmem>>, vector<512x32xbf16>
      tpu.vector_store %arg7[%c0_18, %c0_19], %23 {strides = array<i32>} : memref<512x32xbf16, #tpu.memory_space<vmem>>, vector<512x32xbf16>,
    } else {
    }
    return
  }
  func.func @transform_0(%arg0: i32, %arg1: i32, %arg2: i32) -> (i32, i32) {
    %c0_i32 = arith.constant 0 : i32
    return %arg0, %arg2 : i32, i32
  }
  func.func @transform_1(%arg0: i32, %arg1: i32, %arg2: i32) -> (i32, i32) {
    %c0_i32 = arith.constant 0 : i32
    return %arg2, %arg1 : i32, i32
  }
  func.func @transform_2(%arg0: i32, %arg1: i32, %arg2: i32) -> (i32, i32) {
    %c0_i32 = arith.constant 0 : i32
    %c0_i32_0 = arith.constant 0 : i32
    return %c0_i32, %arg1 : i32, i32
  }
  func.func @transform_3(%arg0: i32, %arg1: i32, %arg2: i32) -> (i32, i32) {
    %c0_i32 = arith.constant 0 : i32
    %c0_i32_0 = arith.constant 0 : i32
    return %c0_i32, %arg1 : i32, i32
  }
  func.func @transform_4(%arg0: i32, %arg1: i32, %arg2: i32) -> (i32, i32) {
    %c0_i32 = arith.constant 0 : i32
    return %arg0, %arg1 : i32, i32
  }
}

</mosaic_0001>

<llo_original>
// kernel: tpu_custom_call.1
$region0: #{tpu_custom_call.1}
  #allocation0 [shape = 'u32[]', space=smem, size = 0x4, offset = 0x4, fixed_abs, tag = 'smem constant byte address 0x4 - core index']
  #allocation1 [shape = 'u32[144,128]{1,0:T(1,128)}', space=vmem, size = 0x12000, scoped, tag = 'internal scratch']
  #allocation2 [shape = 'f32[512,32]{1,0:T(8,128)}', space=vmem, size = 0x40000, scoped, tag = 'scratch operand']
  %s0 = inlined_call_operand.vmem [shape: bf16[512,27], index: 0, kind: input, shape index: {}]
  %s1 = inlined_call_operand.vmem [shape: bf16[27,32], index: 1, kind: input, shape index: {}]
  %s2 = inlined_call_operand.vmem [shape: f32[1,32], index: 2, kind: input, shape index: {}]
  %s3 = inlined_call_operand.vmem [shape: f32[1,32], index: 3, kind: input, shape index: {}]
  %s4 = inlined_call_operand.vmem [shape: bf16[512,32], index: 4, kind: output, shape index: {}]
  %s5 = sld [smem:[#allocation0]]
  $region34: #{tpu_custom_call.1} parent=0
    _
  %s7 = ssub.s32 1, %s5
  %s8 = scalar_select 0, %s7, %s5
  // Predicated region
  $region2: #{tpu_custom_call.1} parent=0 // pred_check
    _
  $region3: #{tpu_custom_call.1} parent=0 // pred_check_branch
    %10 = sbr.rel (0) target = $region5
  $region4: #{tpu_custom_call.1} parent=0 // pred_region
    _
  $region5: #{tpu_custom_call.1} parent=0 // pred_fallthru
    _
  // Predicated region
  $region6: #{tpu_custom_call.1} parent=0 // pred_check
    _
  $region7: #{tpu_custom_call.1} parent=0 // pred_check_branch
    %12 = sbr.rel (0) target = $region9
  $region8: #{tpu_custom_call.1} parent=0 // pred_region
    _
  $region9: #{tpu_custom_call.1} parent=0 // pred_fallthru
    _
  // Predicated region
  $region10: #{tpu_custom_call.1} parent=0 // pred_check
    _
  $region11: #{tpu_custom_call.1} parent=0 // pred_check_branch
    %14 = sbr.rel (0) target = $region13
  $region12: #{tpu_custom_call.1} parent=0 // pred_region
    _
  $region13: #{tpu_custom_call.1} parent=0 // pred_fallthru
    _
  // Predicated region
  $region14: #{tpu_custom_call.1} parent=0 // pred_check
    _
  $region15: #{tpu_custom_call.1} parent=0 // pred_check_branch
    %16 = sbr.rel (0) target = $region17
  $region16: #{tpu_custom_call.1} parent=0 // pred_region
    _
  $region17: #{tpu_custom_call.1} parent=0 // pred_fallthru
    _
  %p18 = scmp.eq.s32.totalorder 0, 0
  // Predicated region
  $region18: #{tpu_custom_call.1} parent=0 // pred_check
    %p19 = pneg %p18
  $region19: #{tpu_custom_call.1} parent=0 // pred_check_branch
    %21 = sbr.rel (%p19) target = $region21
  $region20: #{tpu_custom_call.1} parent=0 // pred_region
    %vm22 = vcmask 261120
    %23 = vst.msk [vmem:[#allocation2] sm:$0xff] %vm22, 0.0
    %24 = vst.msk [vmem:[#allocation2 + $0x8] sm:$0xff] %vm22, 0.0
    %25 = vst.msk [vmem:[#allocation2 + $0x10] sm:$0xff] %vm22, 0.0
    %26 = vst.msk [vmem:[#allocation2 + $0x18] sm:$0xff] %vm22, 0.0
    %27 = vst.msk [vmem:[#allocation2 + $0x20] sm:$0xff] %vm22, 0.0
    %28 = vst.msk [vmem:[#allocation2 + $0x28] sm:$0xff] %vm22, 0.0
    %29 = vst.msk [vmem:[#allocation2 + $0x30] sm:$0xff] %vm22, 0.0
    %30 = vst.msk [vmem:[#allocation2 + $0x38] sm:$0xff] %vm22, 0.0
    %31 = vst.msk [vmem:[#allocation2 + $0x40] sm:$0xff] %vm22, 0.0
    %32 = vst.msk [vmem:[#allocation2 + $0x48] sm:$0xff] %vm22, 0.0
    %33 = vst.msk [vmem:[#allocation2 + $0x50] sm:$0xff] %vm22, 0.0
    %34 = vst.msk [vmem:[#allocation2 + $0x58] sm:$0xff] %vm22, 0.0
    %35 = vst.msk [vmem:[#allocation2 + $0x60] sm:$0xff] %vm22, 0.0
    %36 = vst.msk [vmem:[#allocation2 + $0x68] sm:$0xff] %vm22, 0.0
    %37 = vst.msk [vmem:[#allocation2 + $0x70] sm:$0xff] %vm22, 0.0
    %38 = vst.msk [vmem:[#allocation2 + $0x78] sm:$0xff] %vm22, 0.0
    %39 = vst.msk [vmem:[#allocation2 + $0x80] sm:$0xff] %vm22, 0.0
    %40 = vst.msk [vmem:[#allocation2 + $0x88] sm:$0xff] %vm22, 0.0
    %41 = vst.msk [vmem:[#allocation2 + $0x90] sm:$0xff] %vm22, 0.0
    %42 = vst.msk [vmem:[#allocation2 + $0x98] sm:$0xff] %vm22, 0.0
    %43 = vst.msk [vmem:[#allocation2 + $0xa0] sm:$0xff] %vm22, 0.0
    %44 = vst.msk [vmem:[#allocation2 + $0xa8] sm:$0xff] %vm22, 0.0
    %45 = vst.msk [vmem:[#allocation2 + $0xb0] sm:$0xff] %vm22, 0.0
    %46 = vst.msk [vmem:[#allocation2 + $0xb8] sm:$0xff] %vm22, 0.0
    %47 = vst.msk [vmem:[#allocation2 + $0xc0] sm:$0xff] %vm22, 0.0
    %48 = vst.msk [vmem:[#allocation2 + $0xc8] sm:$0xff] %vm22, 0.0
    %49 = vst.msk [vmem:[#allocation2 + $0xd0] sm:$0xff] %vm22, 0.0
    %50 = vst.msk [vmem:[#allocation2 + $0xd8] sm:$0xff] %vm22, 0.0
    %51 = vst.msk [vmem:[#allocation2 + $0xe0] sm:$0xff] %vm22, 0.0
    %52 = vst.msk [vmem:[#allocation2 + $0xe8] sm:$0xff] %vm22, 0.0
    %53 = vst.msk [vmem:[#allocation2 + $0xf0] sm:$0xff] %vm22, 0.0
    %54 = vst.msk [vmem:[#allocation2 + $0xf8] sm:$0xff] %vm22, 0.0
    %55 = vst.msk [vmem:[#allocation2 + $0x100] sm:$0xff] %vm22, 0.0
    %56 = vst.msk [vmem:[#allocation2 + $0x108] sm:$0xff] %vm22, 0.0
    %57 = vst.msk [vmem:[#allocation2 + $0x110] sm:$0xff] %vm22, 0.0
    %58 = vst.msk [vmem:[#allocation2 + $0x118] sm:$0xff] %vm22, 0.0
    %59 = vst.msk [vmem:[#allocation2 + $0x120] sm:$0xff] %vm22, 0.0
    %60 = vst.msk [vmem:[#allocation2 + $0x128] sm:$0xff] %vm22, 0.0
    %61 = vst.msk [vmem:[#allocation2 + $0x130] sm:$0xff] %vm22, 0.0
    %62 = vst.msk [vmem:[#allocation2 + $0x138] sm:$0xff] %vm22, 0.0
    %63 = vst.msk [vmem:[#allocation2 + $0x140] sm:$0xff] %vm22, 0.0
    %64 = vst.msk [vmem:[#allocation2 + $0x148] sm:$0xff] %vm22, 0.0
    %65 = vst.msk [vmem:[#allocation2 + $0x150] sm:$0xff] %vm22, 0.0
    %66 = vst.msk [vmem:[#allocation2 + $0x158] sm:$0xff] %vm22, 0.0
    %67 = vst.msk [vmem:[#allocation2 + $0x160] sm:$0xff] %vm22, 0.0
    %68 = vst.msk [vmem:[#allocation2 + $0x168] sm:$0xff] %vm22, 0.0
    %69 = vst.msk [vmem:[#allocation2 + $0x170] sm:$0xff] %vm22, 0.0
    %70 = vst.msk [vmem:[#allocation2 + $0x178] sm:$0xff] %vm22, 0.0
    %71 = vst.msk [vmem:[#allocation2 + $0x180] sm:$0xff] %vm22, 0.0
    %72 = vst.msk [vmem:[#allocation2 + $0x188] sm:$0xff] %vm22, 0.0
    %73 = vst.msk [vmem:[#allocation2 + $0x190] sm:$0xff] %vm22, 0.0
    %74 = vst.msk [vmem:[#allocation2 + $0x198] sm:$0xff] %vm22, 0.0
    %75 = vst.msk [vmem:[#allocation2 + $0x1a0] sm:$0xff] %vm22, 0.0
    %76 = vst.msk [vmem:[#allocation2 + $0x1a8] sm:$0xff] %vm22, 0.0
    %77 = vst.msk [vmem:[#allocation2 + $0x1b0] sm:$0xff] %vm22, 0.0
    %78 = vst.msk [vmem:[#allocation2 + $0x1b8] sm:$0xff] %vm22, 0.0
    %79 = vst.msk [vmem:[#allocation2 + $0x1c0] sm:$0xff] %vm22, 0.0
    %80 = vst.msk [vmem:[#allocation2 + $0x1c8] sm:$0xff] %vm22, 0.0
    %81 = vst.msk [vmem:[#allocation2 + $0x1d0] sm:$0xff] %vm22, 0.0
    %82 = vst.msk [vmem:[#allocation2 + $0x1d8] sm:$0xff] %vm22, 0.0
    %83 = vst.msk [vmem:[#allocation2 + $0x1e0] sm:$0xff] %vm22, 0.0
    %84 = vst.msk [vmem:[#allocation2 + $0x1e8] sm:$0xff] %vm22, 0.0
    %85 = vst.msk [vmem:[#allocation2 + $0x1f0] sm:$0xff] %vm22, 0.0
    %86 = vst.msk [vmem:[#allocation2 + $0x1f8] sm:$0xff] %vm22, 0.0
  $region21: #{tpu_custom_call.1} parent=0 // pred_fallthru
    _
  %v87 = vld [vmem:[#allocation2] sm:$0xff]
  %v88 = vld [vmem:[#allocation2 + $0x8] sm:$0xff]
  %v89 = vld [vmem:[#allocation2 + $0x10] sm:$0xff]
  %v90 = vld [vmem:[#allocation2 + $0x18] sm:$0xff]
  %v91 = vld [vmem:[#allocation2 + $0x20] sm:$0xff]
  %v92 = vld [vmem:[#allocation2 + $0x28] sm:$0xff]
  %v93 = vld [vmem:[#allocation2 + $0x30] sm:$0xff]
  %v94 = vld [vmem:[#allocation2 + $0x38] sm:$0xff]
  %v95 = vld [vmem:[#allocation2 + $0x40] sm:$0xff]
  %v96 = vld [vmem:[#allocation2 + $0x48] sm:$0xff]
  %v97 = vld [vmem:[#allocation2 + $0x50] sm:$0xff]
  %v98 = vld [vmem:[#allocation2 + $0x58] sm:$0xff]
  %v99 = vld [vmem:[#allocation2 + $0x60] sm:$0xff]
  %v100 = vld [vmem:[#allocation2 + $0x68] sm:$0xff]
  %v101 = vld [vmem:[#allocation2 + $0x70] sm:$0xff]
  %v102 = vld [vmem:[#allocation2 + $0x78] sm:$0xff]
  %v103 = vld [vmem:[#allocation2 + $0x80] sm:$0xff]
  %v104 = vld [vmem:[#allocation2 + $0x88] sm:$0xff]
  %v105 = vld [vmem:[#allocation2 + $0x90] sm:$0xff]
  %v106 = vld [vmem:[#allocation2 + $0x98] sm:$0xff]
  %v107 = vld [vmem:[#allocation2 + $0xa0] sm:$0xff]
  %v108 = vld [vmem:[#allocation2 + $0xa8] sm:$0xff]
  %v109 = vld [vmem:[#allocation2 + $0xb0] sm:$0xff]
  %v110 = vld [vmem:[#allocation2 + $0xb8] sm:$0xff]
  %v111 = vld [vmem:[#allocation2 + $0xc0] sm:$0xff]
  %v112 = vld [vmem:[#allocation2 + $0xc8] sm:$0xff]
  %v113 = vld [vmem:[#allocation2 + $0xd0] sm:$0xff]
  %v114 = vld [vmem:[#allocation2 + $0xd8] sm:$0xff]
  %v115 = vld [vmem:[#allocation2 + $0xe0] sm:$0xff]
  %v116 = vld [vmem:[#allocation2 + $0xe8] sm:$0xff]
  %v117 = vld [vmem:[#allocation2 + $0xf0] sm:$0xff]
  %v118 = vld [vmem:[#allocation2 + $0xf8] sm:$0xff]
  %v119 = vld [vmem:[#allocation2 + $0x100] sm:$0xff]
  %v120 = vld [vmem:[#allocation2 + $0x108] sm:$0xff]
  %v121 = vld [vmem:[#allocation2 + $0x110] sm:$0xff]
  %v122 = vld [vmem:[#allocation2 + $0x118] sm:$0xff]
  %v123 = vld [vmem:[#allocation2 + $0x120] sm:$0xff]
  %v124 = vld [vmem:[#allocation2 + $0x128] sm:$0xff]
  %v125 = vld [vmem:[#allocation2 + $0x130] sm:$0xff]
  %v126 = vld [vmem:[#allocation2 + $0x138] sm:$0xff]
  %v127 = vld [vmem:[#allocation2 + $0x140] sm:$0xff]
  %v128 = vld [vmem:[#allocation2 + $0x148] sm:$0xff]
  %v129 = vld [vmem:[#allocation2 + $0x150] sm:$0xff]
  %v130 = vld [vmem:[#allocation2 + $0x158] sm:$0xff]
  %v131 = vld [vmem:[#allocation2 + $0x160] sm:$0xff]
  %v132 = vld [vmem:[#allocation2 + $0x168] sm:$0xff]
  %v133 = vld [vmem:[#allocation2 + $0x170] sm:$0xff]
  %v134 = vld [vmem:[#allocation2 + $0x178] sm:$0xff]
  %v135 = vld [vmem:[#allocation2 + $0x180] sm:$0xff]
  %v136 = vld [vmem:[#allocation2 + $0x188] sm:$0xff]
  %v137 = vld [vmem:[#allocation2 + $0x190] sm:$0xff]
  %v138 = vld [vmem:[#allocation2 + $0x198] sm:$0xff]
  %v139 = vld [vmem:[#allocation2 + $0x1a0] sm:$0xff]
  %v140 = vld [vmem:[#allocation2 + $0x1a8] sm:$0xff]
  %v141 = vld [vmem:[#allocation2 + $0x1b0] sm:$0xff]
  %v142 = vld [vmem:[#allocation2 + $0x1b8] sm:$0xff]
  %v143 = vld [vmem:[#allocation2 + $0x1c0] sm:$0xff]
  %v144 = vld [vmem:[#allocation2 + $0x1c8] sm:$0xff]
  %v145 = vld [vmem:[#allocation2 + $0x1d0] sm:$0xff]
  %v146 = vld [vmem:[#allocation2 + $0x1d8] sm:$0xff]
  %v147 = vld [vmem:[#allocation2 + $0x1e0] sm:$0xff]
  %v148 = vld [vmem:[#allocation2 + $0x1e8] sm:$0xff]
  %v149 = vld [vmem:[#allocation2 + $0x1f0] sm:$0xff]
  %v150 = vld [vmem:[#allocation2 + $0x1f8] sm:$0xff]
  %v151 = vld [vmem:[%s0] sm:$0xf]
  %v152 = vld [vmem:[%s0 + $0x4] sm:$0xf]
  %v153 = vld [vmem:[%s0 + $0x8] sm:$0xf]
  %v154 = vld [vmem:[%s0 + $0xc] sm:$0xf]
  %v155 = vld [vmem:[%s0 + $0x10] sm:$0xf]
  %v156 = vld [vmem:[%s0 + $0x14] sm:$0xf]
  %v157 = vld [vmem:[%s0 + $0x18] sm:$0xf]
  %v158 = vld [vmem:[%s0 + $0x1c] sm:$0xf]
  %v159 = vld [vmem:[%s0 + $0x20] sm:$0xf]
  %v160 = vld [vmem:[%s0 + $0x24] sm:$0xf]
  %v161 = vld [vmem:[%s0 + $0x28] sm:$0xf]
  %v162 = vld [vmem:[%s0 + $0x2c] sm:$0xf]
  %v163 = vld [vmem:[%s0 + $0x30] sm:$0xf]
  %v164 = vld [vmem:[%s0 + $0x34] sm:$0xf]
  %v165 = vld [vmem:[%s0 + $0x38] sm:$0xf]
  %v166 = vld [vmem:[%s0 + $0x3c] sm:$0xf]
  %v167 = vld [vmem:[%s0 + $0x40] sm:$0xf]
  %v168 = vld [vmem:[%s0 + $0x44] sm:$0xf]
  %v169 = vld [vmem:[%s0 + $0x48] sm:$0xf]
  %v170 = vld [vmem:[%s0 + $0x4c] sm:$0xf]
  %v171 = vld [vmem:[%s0 + $0x50] sm:$0xf]
  %v172 = vld [vmem:[%s0 + $0x54] sm:$0xf]
  %v173 = vld [vmem:[%s0 + $0x58] sm:$0xf]
  %v174 = vld [vmem:[%s0 + $0x5c] sm:$0xf]
  %v175 = vld [vmem:[%s0 + $0x60] sm:$0xf]
  %v176 = vld [vmem:[%s0 + $0x64] sm:$0xf]
  %v177 = vld [vmem:[%s0 + $0x68] sm:$0xf]
  %v178 = vld [vmem:[%s0 + $0x6c] sm:$0xf]
  %v179 = vld [vmem:[%s0 + $0x70] sm:$0xf]
  %v180 = vld [vmem:[%s0 + $0x74] sm:$0xf]
  %v181 = vld [vmem:[%s0 + $0x78] sm:$0xf]
  %v182 = vld [vmem:[%s0 + $0x7c] sm:$0xf]
  %v183 = vld [vmem:[%s0 + $0x80] sm:$0xf]
  %v184 = vld [vmem:[%s0 + $0x84] sm:$0xf]
  %v185 = vld [vmem:[%s0 + $0x88] sm:$0xf]
  %v186 = vld [vmem:[%s0 + $0x8c] sm:$0xf]
  %v187 = vld [vmem:[%s0 + $0x90] sm:$0xf]
  %v188 = vld [vmem:[%s0 + $0x94] sm:$0xf]
  %v189 = vld [vmem:[%s0 + $0x98] sm:$0xf]
  %v190 = vld [vmem:[%s0 + $0x9c] sm:$0xf]
  %v191 = vld [vmem:[%s0 + $0xa0] sm:$0xf]
  %v192 = vld [vmem:[%s0 + $0xa4] sm:$0xf]
  %v193 = vld [vmem:[%s0 + $0xa8] sm:$0xf]
  %v194 = vld [vmem:[%s0 + $0xac] sm:$0xf]
  %v195 = vld [vmem:[%s0 + $0xb0] sm:$0xf]
  %v196 = vld [vmem:[%s0 + $0xb4] sm:$0xf]
  %v197 = vld [vmem:[%s0 + $0xb8] sm:$0xf]
  %v198 = vld [vmem:[%s0 + $0xbc] sm:$0xf]
  %v199 = vld [vmem:[%s0 + $0xc0] sm:$0xf]
  %v200 = vld [vmem:[%s0 + $0xc4] sm:$0xf]
  %v201 = vld [vmem:[%s0 + $0xc8] sm:$0xf]
  %v202 = vld [vmem:[%s0 + $0xcc] sm:$0xf]
  %v203 = vld [vmem:[%s0 + $0xd0] sm:$0xf]
  %v204 = vld [vmem:[%s0 + $0xd4] sm:$0xf]
  %v205 = vld [vmem:[%s0 + $0xd8] sm:$0xf]
  %v206 = vld [vmem:[%s0 + $0xdc] sm:$0xf]
  %v207 = vld [vmem:[%s0 + $0xe0] sm:$0xf]
  %v208 = vld [vmem:[%s0 + $0xe4] sm:$0xf]
  %v209 = vld [vmem:[%s0 + $0xe8] sm:$0xf]
  %v210 = vld [vmem:[%s0 + $0xec] sm:$0xf]
  %v211 = vld [vmem:[%s0 + $0xf0] sm:$0xf]
  %v212 = vld [vmem:[%s0 + $0xf4] sm:$0xf]
  %v213 = vld [vmem:[%s0 + $0xf8] sm:$0xf]
  %v214 = vld [vmem:[%s0 + $0xfc] sm:$0xf]
  %v215 = vld [vmem:[%s1] sm:$0xf]
  %v216 = vld [vmem:[%s1 + $0x4] sm:$0xf]
  %v217 = vld [vmem:[%s1 + $0x8] sm:$0xf]
  %v218 = vld [vmem:[%s1 + $0xc] sm:$0x3]
  %v283 = vunpack.c.l.b16 %v151
  %v284 = vunpack.c.l.b16 %v152
  %v285 = vunpack.c.l.b16 %v153
  %v286 = vunpack.c.l.b16 %v154
  %v287 = vunpack.c.l.b16 %v155
  %v288 = vunpack.c.l.b16 %v156
  %v289 = vunpack.c.l.b16 %v157
  %v290 = vunpack.c.l.b16 %v158
  %v291 = vunpack.c.l.b16 %v159
  %v292 = vunpack.c.l.b16 %v160
  %v293 = vunpack.c.l.b16 %v161
  %v294 = vunpack.c.l.b16 %v162
  %v295 = vunpack.c.l.b16 %v163
  %v296 = vunpack.c.l.b16 %v164
  %v297 = vunpack.c.l.b16 %v165
  %v298 = vunpack.c.l.b16 %v166
  %v299 = vunpack.c.l.b16 %v167
  %v300 = vunpack.c.l.b16 %v168
  %v301 = vunpack.c.l.b16 %v169
  %v302 = vunpack.c.l.b16 %v170
  %v303 = vunpack.c.l.b16 %v171
  %v304 = vunpack.c.l.b16 %v172
  %v305 = vunpack.c.l.b16 %v173
  %v306 = vunpack.c.l.b16 %v174
  %v307 = vunpack.c.l.b16 %v175
  %v308 = vunpack.c.l.b16 %v176
  %v309 = vunpack.c.l.b16 %v177
  %v310 = vunpack.c.l.b16 %v178
  %v311 = vunpack.c.l.b16 %v179
  %v312 = vunpack.c.l.b16 %v180
  %v313 = vunpack.c.l.b16 %v181
  %v314 = vunpack.c.l.b16 %v182
  %v315 = vunpack.c.l.b16 %v183
  %v316 = vunpack.c.l.b16 %v184
  %v317 = vunpack.c.l.b16 %v185
  %v318 = vunpack.c.l.b16 %v186
  %v319 = vunpack.c.l.b16 %v187
  %v320 = vunpack.c.l.b16 %v188
  %v321 = vunpack.c.l.b16 %v189
  %v322 = vunpack.c.l.b16 %v190
  %v323 = vunpack.c.l.b16 %v191
  %v324 = vunpack.c.l.b16 %v192
  %v325 = vunpack.c.l.b16 %v193
  %v326 = vunpack.c.l.b16 %v194
  %v327 = vunpack.c.l.b16 %v195
  %v328 = vunpack.c.l.b16 %v196
  %v329 = vunpack.c.l.b16 %v197
  %v330 = vunpack.c.l.b16 %v198
  %v331 = vunpack.c.l.b16 %v199
  %v332 = vunpack.c.l.b16 %v200
  %v333 = vunpack.c.l.b16 %v201
  %v334 = vunpack.c.l.b16 %v202
  %v335 = vunpack.c.l.b16 %v203
  %v336 = vunpack.c.l.b16 %v204
  %v337 = vunpack.c.l.b16 %v205
  %v338 = vunpack.c.l.b16 %v206
  %v339 = vunpack.c.l.b16 %v207
  %v340 = vunpack.c.l.b16 %v208
  %v341 = vunpack.c.l.b16 %v209
  %v342 = vunpack.c.l.b16 %v210
  %v343 = vunpack.c.l.b16 %v211
  %v344 = vunpack.c.l.b16 %v212
  %v345 = vunpack.c.l.b16 %v213
  %v346 = vunpack.c.l.b16 %v214
  %v347 = vpack.c.b16 %v284, %v283
  %v348 = vpack.c.b16 %v286, %v285
  %v349 = vpack.c.b16 %v288, %v287
  %v350 = vpack.c.b16 %v290, %v289
  %v351 = vpack.c.b16 %v292, %v291
  %v352 = vpack.c.b16 %v294, %v293
  %v353 = vpack.c.b16 %v296, %v295
  %v354 = vpack.c.b16 %v298, %v297
  %v355 = vpack.c.b16 %v300, %v299
  %v356 = vpack.c.b16 %v302, %v301
  %v357 = vpack.c.b16 %v304, %v303
  %v358 = vpack.c.b16 %v306, %v305
  %v359 = vpack.c.b16 %v308, %v307
  %v360 = vpack.c.b16 %v310, %v309
  %v361 = vpack.c.b16 %v312, %v311
  %v362 = vpack.c.b16 %v314, %v313
  %v363 = vpack.c.b16 %v316, %v315
  %v364 = vpack.c.b16 %v318, %v317
  %v365 = vpack.c.b16 %v320, %v319
  %v366 = vpack.c.b16 %v322, %v321
  %v367 = vpack.c.b16 %v324, %v323
  %v368 = vpack.c.b16 %v326, %v325
  %v369 = vpack.c.b16 %v328, %v327
  %v370 = vpack.c.b16 %v330, %v329
  %v371 = vpack.c.b16 %v332, %v331
  %v372 = vpack.c.b16 %v334, %v333
  %v373 = vpack.c.b16 %v336, %v335
  %v374 = vpack.c.b16 %v338, %v337
  %v375 = vpack.c.b16 %v340, %v339
  %v376 = vpack.c.b16 %v342, %v341
  %v377 = vpack.c.b16 %v344, %v343
  %v378 = vpack.c.b16 %v346, %v345
  %v383 = vunpack.c.l.b16 %v215
  %v384 = vunpack.c.l.b16 %v216
  %v385 = vunpack.c.l.b16 %v217
  %v386 = vunpack.c.l.b16 %v218
  %v387 = vpack.c.b16 %v384, %v383
  %v388 = vpack.c.b16 %v386, %v385
  %vm390 = vcmask 220160
  %v392 = vsel %vm390, %v347, 0
  %v395 = vsel %vm390, %v348, 0
  %v398 = vsel %vm390, %v349, 0
  %v401 = vsel %vm390, %v350, 0
  %v404 = vsel %vm390, %v351, 0
  %v407 = vsel %vm390, %v352, 0
  %v410 = vsel %vm390, %v353, 0
  %v413 = vsel %vm390, %v354, 0
  %v416 = vsel %vm390, %v355, 0
  %v419 = vsel %vm390, %v356, 0
  %v422 = vsel %vm390, %v357, 0
  %v425 = vsel %vm390, %v358, 0
  %v428 = vsel %vm390, %v359, 0
  %v431 = vsel %vm390, %v360, 0
  %v434 = vsel %vm390, %v361, 0
  %v437 = vsel %vm390, %v362, 0
  %v440 = vsel %vm390, %v363, 0
  %v443 = vsel %vm390, %v364, 0
  %v446 = vsel %vm390, %v365, 0
  %v449 = vsel %vm390, %v366, 0
  %v452 = vsel %vm390, %v367, 0
  %v455 = vsel %vm390, %v368, 0
  %v458 = vsel %vm390, %v369, 0
  %v461 = vsel %vm390, %v370, 0
  %v464 = vsel %vm390, %v371, 0
  %v467 = vsel %vm390, %v372, 0
  %v470 = vsel %vm390, %v373, 0
  %v473 = vsel %vm390, %v374, 0
  %v476 = vsel %vm390, %v375, 0
  %v479 = vsel %vm390, %v376, 0
  %v482 = vsel %vm390, %v377, 0
  %v485 = vsel %vm390, %v378, 0
  %vm487 = vcmask 1044480
  %vm488 = vcmask 1045504
  %v489 = vsel %vm487, 4294967295, 65535
  %v490 = vsel %vm488, %v489, 0
  %v492 = vand.u32 %v388, %v490
  %494 = vmatprep.subr.bf16.mxu0 0
  %495 = vmatpush1.bf16.msra.mxu0 %v387
  %496 = vmatprep.subr.bf16.mxu0 0
  %497 = vmatpush1.bf16.msra.mxu0 %v492
  %498 = vmatprep.subr.bf16.mxu0 0
  %499 = vmatpush1.bf16.msra.mxu0 0
  %500 = vmatprep.subr.bf16.mxu0 0
  %501 = vmatpush1.bf16.msra.mxu0 0
  %502 = vmatprep.subr.bf16.mxu0 0
  %503 = vmatpush1.bf16.msra.mxu0 0
  %504 = vmatprep.subr.bf16.mxu0 0
  %505 = vmatpush1.bf16.msra.mxu0 0
  %506 = vmatprep.subr.bf16.mxu0 0
  %507 = vmatpush1.bf16.msra.mxu0 0
  %508 = vmatprep.subr.bf16.mxu0 0
  %509 = vmatpush1.bf16.msra.mxu0 0
  %510 = vmatprep.subr.bf16.mxu0 0
  %511 = vmatpush1.bf16.msra.mxu0 0
  %512 = vmatprep.subr.bf16.mxu0 0
  %513 = vmatpush1.bf16.msra.mxu0 0
  %514 = vmatprep.subr.bf16.mxu0 0
  %515 = vmatpush1.bf16.msra.mxu0 0
  %516 = vmatprep.subr.bf16.mxu0 0
  %517 = vmatpush1.bf16.msra.mxu0 0
  %518 = vmatprep.subr.bf16.mxu0 0
  %519 = vmatpush1.bf16.msra.mxu0 0
  %520 = vmatprep.subr.bf16.mxu0 0
  %521 = vmatpush1.bf16.msra.mxu0 0
  %522 = vmatprep.subr.bf16.mxu0 0
  %523 = vmatpush1.bf16.msra.mxu0 0
  %524 = vmatprep.subr.bf16.mxu0 0
  %525 = vmatpush1.bf16.msra.mxu0 0
  %526 = vmatprep.mubr.bf16.mxu0 0
  %527 = vmatmul.mubr.bf16.gmra.mrb[0].mxu0 %v392
  %v528 = vpop.f32.mrb[0].mxu0
  %v529 = vadd.f32 0.0, %v528
  %v530 = vpop.f32.mrb[0].mxu0
  %v531 = vpop.f32.mrb[0].mxu0
  %v532 = vadd.f32 0.0, %v531
  %v533 = vpop.f32.mrb[0].mxu0
  %534 = vmatprep.mubr.bf16.mxu0 0
  %535 = vmatmul.mubr.bf16.gmra.mrb[0].mxu0 %v395
  %v536 = vpop.f32.mrb[0].mxu0
  %v537 = vadd.f32 0.0, %v536
  %v538 = vpop.f32.mrb[0].mxu0
  %v539 = vpop.f32.mrb[0].mxu0
  %v540 = vadd.f32 0.0, %v539
  %v541 = vpop.f32.mrb[0].mxu0
  %542 = vmatprep.mubr.bf16.mxu0 0
  %543 = vmatmul.mubr.bf16.gmra.mrb[0].mxu0 %v398
  %v544 = vpop.f32.mrb[0].mxu0
  %v545 = vadd.f32 0.0, %v544
  %v546 = vpop.f32.mrb[0].mxu0
  %v547 = vpop.f32.mrb[0].mxu0
  %v548 = vadd.f32 0.0, %v547
  %v549 = vpop.f32.mrb[0].mxu0
  %550 = vmatprep.mubr.bf16.mxu0 0
  %551 = vmatmul.mubr.bf16.gmra.mrb[0].mxu0 %v401
  %v552 = vpop.f32.mrb[0].mxu0
  %v553 = vadd.f32 0.0, %v552
  %v554 = vpop.f32.mrb[0].mxu0
  %v555 = vpop.f32.mrb[0].mxu0
  %v556 = vadd.f32 0.0, %v555
  %v557 = vpop.f32.mrb[0].mxu0
  %558 = vmatprep.mubr.bf16.mxu0 0
  %559 = vmatmul.mubr.bf16.gmra.mrb[0].mxu0 %v404
  %v560 = vpop.f32.mrb[0].mxu0
  %v561 = vadd.f32 0.0, %v560
  %v562 = vpop.f32.mrb[0].mxu0
  %v563 = vpop.f32.mrb[0].mxu0
  %v564 = vadd.f32 0.0, %v563
  %v565 = vpop.f32.mrb[0].mxu0
  %566 = vmatprep.mubr.bf16.mxu0 0
  %567 = vmatmul.mubr.bf16.gmra.mrb[0].mxu0 %v407
  %v568 = vpop.f32.mrb[0].mxu0
  %v569 = vadd.f32 0.0, %v568
  %v570 = vpop.f32.mrb[0].mxu0
  %v571 = vpop.f32.mrb[0].mxu0
  %v572 = vadd.f32 0.0, %v571
  %v573 = vpop.f32.mrb[0].mxu0
  %574 = vmatprep.mubr.bf16.mxu0 0
  %575 = vmatmul.mubr.bf16.gmra.mrb[0].mxu0 %v410
  %v576 = vpop.f32.mrb[0].mxu0
  %v577 = vadd.f32 0.0, %v576
  %v578 = vpop.f32.mrb[0].mxu0
  %v579 = vpop.f32.mrb[0].mxu0
  %v580 = vadd.f32 0.0, %v579
  %v581 = vpop.f32.mrb[0].mxu0
  %582 = vmatprep.mubr.bf16.mxu0 0
  %583 = vmatmul.mubr.bf16.gmra.mrb[0].mxu0 %v413
  %v584 = vpop.f32.mrb[0].mxu0
  %v585 = vadd.f32 0.0, %v584
  %v586 = vpop.f32.mrb[0].mxu0
  %v587 = vpop.f32.mrb[0].mxu0
  %v588 = vadd.f32 0.0, %v587
  %v589 = vpop.f32.mrb[0].mxu0
  %590 = vmatprep.mubr.bf16.mxu0 0
  %591 = vmatmul.mubr.bf16.gmra.mrb[0].mxu0 %v416
  %v592 = vpop.f32.mrb[0].mxu0
  %v593 = vadd.f32 0.0, %v592
  %v594 = vpop.f32.mrb[0].mxu0
  %v595 = vpop.f32.mrb[0].mxu0
  %v596 = vadd.f32 0.0, %v595
  %v597 = vpop.f32.mrb[0].mxu0
  %598 = vmatprep.mubr.bf16.mxu0 0
  %599 = vmatmul.mubr.bf16.gmra.mrb[0].mxu0 %v419
  %v600 = vpop.f32.mrb[0].mxu0
  %v601 = vadd.f32 0.0, %v600
  %v602 = vpop.f32.mrb[0].mxu0
  %v603 = vpop.f32.mrb[0].mxu0
  %v604 = vadd.f32 0.0, %v603
  %v605 = vpop.f32.mrb[0].mxu0
  %606 = vmatprep.mubr.bf16.mxu0 0
  %607 = vmatmul.mubr.bf16.gmra.mrb[0].mxu0 %v422
  %v608 = vpop.f32.mrb[0].mxu0
  %v609 = vadd.f32 0.0, %v608
  %v610 = vpop.f32.mrb[0].mxu0
  %v611 = vpop.f32.mrb[0].mxu0
  %v612 = vadd.f32 0.0, %v611
  %v613 = vpop.f32.mrb[0].mxu0
  %614 = vmatprep.mubr.bf16.mxu0 0
  %615 = vmatmul.mubr.bf16.gmra.mrb[0].mxu0 %v425
  %v616 = vpop.f32.mrb[0].mxu0
  %v617 = vadd.f32 0.0, %v616
  %v618 = vpop.f32.mrb[0].mxu0
  %v619 = vpop.f32.mrb[0].mxu0
  %v620 = vadd.f32 0.0, %v619
  %v621 = vpop.f32.mrb[0].mxu0
  %622 = vmatprep.mubr.bf16.mxu0 0
  %623 = vmatmul.mubr.bf16.gmra.mrb[0].mxu0 %v428
  %v624 = vpop.f32.mrb[0].mxu0
  %v625 = vadd.f32 0.0, %v624
  %v626 = vpop.f32.mrb[0].mxu0
  %v627 = vpop.f32.mrb[0].mxu0
  %v628 = vadd.f32 0.0, %v627
  %v629 = vpop.f32.mrb[0].mxu0
  %630 = vmatprep.mubr.bf16.mxu0 0
  %631 = vmatmul.mubr.bf16.gmra.mrb[0].mxu0 %v431
  %v632 = vpop.f32.mrb[0].mxu0
  %v633 = vadd.f32 0.0, %v632
  %v634 = vpop.f32.mrb[0].mxu0
  %v635 = vpop.f32.mrb[0].mxu0
  %v636 = vadd.f32 0.0, %v635
  %v637 = vpop.f32.mrb[0].mxu0
  %638 = vmatprep.mubr.bf16.mxu0 0
  %639 = vmatmul.mubr.bf16.gmra.mrb[0].mxu0 %v434
  %v640 = vpop.f32.mrb[0].mxu0
  %v641 = vadd.f32 0.0, %v640
  %v642 = vpop.f32.mrb[0].mxu0
  %v643 = vpop.f32.mrb[0].mxu0
  %v644 = vadd.f32 0.0, %v643
  %v645 = vpop.f32.mrb[0].mxu0
  %646 = vmatprep.mubr.bf16.mxu0 0
  %647 = vmatmul.mubr.bf16.gmra.mrb[0].mxu0 %v437
  %v648 = vpop.f32.mrb[0].mxu0
  %v649 = vadd.f32 0.0, %v648
  %v650 = vpop.f32.mrb[0].mxu0
  %v651 = vpop.f32.mrb[0].mxu0
  %v652 = vadd.f32 0.0, %v651
  %v653 = vpop.f32.mrb[0].mxu0
  %654 = vmatprep.mubr.bf16.mxu0 0
  %655 = vmatmul.mubr.bf16.gmra.mrb[0].mxu0 %v440
  %v656 = vpop.f32.mrb[0].mxu0
  %v657 = vadd.f32 0.0, %v656
  %v658 = vpop.f32.mrb[0].mxu0
  %v659 = vpop.f32.mrb[0].mxu0
  %v660 = vadd.f32 0.0, %v659
  %v661 = vpop.f32.mrb[0].mxu0
  %662 = vmatprep.mubr.bf16.mxu0 0
  %663 = vmatmul.mubr.bf16.gmra.mrb[0].mxu0 %v443
  %v664 = vpop.f32.mrb[0].mxu0
  %v665 = vadd.f32 0.0, %v664
  %v666 = vpop.f32.mrb[0].mxu0
  %v667 = vpop.f32.mrb[0].mxu0
  %v668 = vadd.f32 0.0, %v667
  %v669 = vpop.f32.mrb[0].mxu0
  %670 = vmatprep.mubr.bf16.mxu0 0
  %671 = vmatmul.mubr.bf16.gmra.mrb[0].mxu0 %v446
  %v672 = vpop.f32.mrb[0].mxu0
  %v673 = vadd.f32 0.0, %v672
  %v674 = vpop.f32.mrb[0].mxu0
  %v675 = vpop.f32.mrb[0].mxu0
  %v676 = vadd.f32 0.0, %v675
  %v677 = vpop.f32.mrb[0].mxu0
  %678 = vmatprep.mubr.bf16.mxu0 0
  %679 = vmatmul.mubr.bf16.gmra.mrb[0].mxu0 %v449
  %v680 = vpop.f32.mrb[0].mxu0
  %v681 = vadd.f32 0.0, %v680
  %v682 = vpop.f32.mrb[0].mxu0
  %v683 = vpop.f32.mrb[0].mxu0
  %v684 = vadd.f32 0.0, %v683
  %v685 = vpop.f32.mrb[0].mxu0
  %686 = vmatprep.mubr.bf16.mxu0 0
  %687 = vmatmul.mubr.bf16.gmra.mrb[0].mxu0 %v452
  %v688 = vpop.f32.mrb[0].mxu0
  %v689 = vadd.f32 0.0, %v688
  %v690 = vpop.f32.mrb[0].mxu0
  %v691 = vpop.f32.mrb[0].mxu0
  %v692 = vadd.f32 0.0, %v691
  %v693 = vpop.f32.mrb[0].mxu0
  %694 = vmatprep.mubr.bf16.mxu0 0
  %695 = vmatmul.mubr.bf16.gmra.mrb[0].mxu0 %v455
  %v696 = vpop.f32.mrb[0].mxu0
  %v697 = vadd.f32 0.0, %v696
  %v698 = vpop.f32.mrb[0].mxu0
  %v699 = vpop.f32.mrb[0].mxu0
  %v700 = vadd.f32 0.0, %v699
  %v701 = vpop.f32.mrb[0].mxu0
  %702 = vmatprep.mubr.bf16.mxu0 0
  %703 = vmatmul.mubr.bf16.gmra.mrb[0].mxu0 %v458
  %v704 = vpop.f32.mrb[0].mxu0
  %v705 = vadd.f32 0.0, %v704
  %v706 = vpop.f32.mrb[0].mxu0
  %v707 = vpop.f32.mrb[0].mxu0
  %v708 = vadd.f32 0.0, %v707
  %v709 = vpop.f32.mrb[0].mxu0
  %710 = vmatprep.mubr.bf16.mxu0 0
  %711 = vmatmul.mubr.bf16.gmra.mrb[0].mxu0 %v461
  %v712 = vpop.f32.mrb[0].mxu0
  %v713 = vadd.f32 0.0, %v712
  %v714 = vpop.f32.mrb[0].mxu0
  %v715 = vpop.f32.mrb[0].mxu0
  %v716 = vadd.f32 0.0, %v715
  %v717 = vpop.f32.mrb[0].mxu0
  %718 = vmatprep.mubr.bf16.mxu0 0
  %719 = vmatmul.mubr.bf16.gmra.mrb[0].mxu0 %v464
  %v720 = vpop.f32.mrb[0].mxu0
  %v721 = vadd.f32 0.0, %v720
  %v722 = vpop.f32.mrb[0].mxu0
  %v723 = vpop.f32.mrb[0].mxu0
  %v724 = vadd.f32 0.0, %v723
  %v725 = vpop.f32.mrb[0].mxu0
  %726 = vmatprep.mubr.bf16.mxu0 0
  %727 = vmatmul.mubr.bf16.gmra.mrb[0].mxu0 %v467
  %v728 = vpop.f32.mrb[0].mxu0
  %v729 = vadd.f32 0.0, %v728
  %v730 = vpop.f32.mrb[0].mxu0
  %v731 = vpop.f32.mrb[0].mxu0
  %v732 = vadd.f32 0.0, %v731
  %v733 = vpop.f32.mrb[0].mxu0
  %734 = vmatprep.mubr.bf16.mxu0 0
  %735 = vmatmul.mubr.bf16.gmra.mrb[0].mxu0 %v470
  %v736 = vpop.f32.mrb[0].mxu0
  %v737 = vadd.f32 0.0, %v736
  %v738 = vpop.f32.mrb[0].mxu0
  %v739 = vpop.f32.mrb[0].mxu0
  %v740 = vadd.f32 0.0, %v739
  %v741 = vpop.f32.mrb[0].mxu0
  %742 = vmatprep.mubr.bf16.mxu0 0
  %743 = vmatmul.mubr.bf16.gmra.mrb[0].mxu0 %v473
  %v744 = vpop.f32.mrb[0].mxu0
  %v745 = vadd.f32 0.0, %v744
  %v746 = vpop.f32.mrb[0].mxu0
  %v747 = vpop.f32.mrb[0].mxu0
  %v748 = vadd.f32 0.0, %v747
  %v749 = vpop.f32.mrb[0].mxu0
  %750 = vmatprep.mubr.bf16.mxu0 0
  %751 = vmatmul.mubr.bf16.gmra.mrb[0].mxu0 %v476
  %v752 = vpop.f32.mrb[0].mxu0
  %v753 = vadd.f32 0.0, %v752
  %v754 = vpop.f32.mrb[0].mxu0
  %v755 = vpop.f32.mrb[0].mxu0
  %v756 = vadd.f32 0.0, %v755
  %v757 = vpop.f32.mrb[0].mxu0
  %758 = vmatprep.mubr.bf16.mxu0 0
  %759 = vmatmul.mubr.bf16.gmra.mrb[0].mxu0 %v479
  %v760 = vpop.f32.mrb[0].mxu0
  %v761 = vadd.f32 0.0, %v760
  %v762 = vpop.f32.mrb[0].mxu0
  %v763 = vpop.f32.mrb[0].mxu0
  %v764 = vadd.f32 0.0, %v763
  %v765 = vpop.f32.mrb[0].mxu0
  %766 = vmatprep.mubr.bf16.mxu0 0
  %767 = vmatmul.mubr.bf16.gmra.mrb[0].mxu0 %v482
  %v768 = vpop.f32.mrb[0].mxu0
  %v769 = vadd.f32 0.0, %v768
  %v770 = vpop.f32.mrb[0].mxu0
  %v771 = vpop.f32.mrb[0].mxu0
  %v772 = vadd.f32 0.0, %v771
  %v773 = vpop.f32.mrb[0].mxu0
  %774 = vmatprep.mubr.bf16.mxu0 0
  %775 = vmatmul.mubr.bf16.gmra.mrb[0].mxu0 %v485
  %v776 = vpop.f32.mrb[0].mxu0
  %v777 = vadd.f32 0.0, %v776
  %v778 = vpop.f32.mrb[0].mxu0
  %v779 = vpop.f32.mrb[0].mxu0
  %v780 = vadd.f32 0.0, %v779
  %v781 = vpop.f32.mrb[0].mxu0
  %782 = vdwg.mxu0
  %v783 = vadd.f32 %v87, %v529
  %v784 = vadd.f32 %v88, %v532
  %v785 = vadd.f32 %v89, %v537
  %v786 = vadd.f32 %v90, %v540
  %v787 = vadd.f32 %v91, %v545
  %v788 = vadd.f32 %v92, %v548
  %v789 = vadd.f32 %v93, %v553
  %v790 = vadd.f32 %v94, %v556
  %v791 = vadd.f32 %v95, %v561
  %v792 = vadd.f32 %v96, %v564
  %v793 = vadd.f32 %v97, %v569
  %v794 = vadd.f32 %v98, %v572
  %v795 = vadd.f32 %v99, %v577
  %v796 = vadd.f32 %v100, %v580
  %v797 = vadd.f32 %v101, %v585
  %v798 = vadd.f32 %v102, %v588
  %v799 = vadd.f32 %v103, %v593
  %v800 = vadd.f32 %v104, %v596
  %v801 = vadd.f32 %v105, %v601
  %v802 = vadd.f32 %v106, %v604
  %v803 = vadd.f32 %v107, %v609
  %v804 = vadd.f32 %v108, %v612
  %v805 = vadd.f32 %v109, %v617
  %v806 = vadd.f32 %v110, %v620
  %v807 = vadd.f32 %v111, %v625
  %v808 = vadd.f32 %v112, %v628
  %v809 = vadd.f32 %v113, %v633
  %v810 = vadd.f32 %v114, %v636
  %v811 = vadd.f32 %v115, %v641
  %v812 = vadd.f32 %v116, %v644
  %v813 = vadd.f32 %v117, %v649
  %v814 = vadd.f32 %v118, %v652
  %v815 = vadd.f32 %v119, %v657
  %v816 = vadd.f32 %v120, %v660
  %v817 = vadd.f32 %v121, %v665
  %v818 = vadd.f32 %v122, %v668
  %v819 = vadd.f32 %v123, %v673
  %v820 = vadd.f32 %v124, %v676
  %v821 = vadd.f32 %v125, %v681
  %v822 = vadd.f32 %v126, %v684
  %v823 = vadd.f32 %v127, %v689
  %v824 = vadd.f32 %v128, %v692
  %v825 = vadd.f32 %v129, %v697
  %v826 = vadd.f32 %v130, %v700
  %v827 = vadd.f32 %v131, %v705
  %v828 = vadd.f32 %v132, %v708
  %v829 = vadd.f32 %v133, %v713
  %v830 = vadd.f32 %v134, %v716
  %v831 = vadd.f32 %v135, %v721
  %v832 = vadd.f32 %v136, %v724
  %v833 = vadd.f32 %v137, %v729
  %v834 = vadd.f32 %v138, %v732
  %v835 = vadd.f32 %v139, %v737
  %v836 = vadd.f32 %v140, %v740
  %v837 = vadd.f32 %v141, %v745
  %v838 = vadd.f32 %v142, %v748
  %v839 = vadd.f32 %v143, %v753
  %v840 = vadd.f32 %v144, %v756
  %v841 = vadd.f32 %v145, %v761
  %v842 = vadd.f32 %v146, %v764
  %v843 = vadd.f32 %v147, %v769
  %v844 = vadd.f32 %v148, %v772
  %v845 = vadd.f32 %v149, %v777
  %v846 = vadd.f32 %v150, %v780
  %vm847 = vcmask 261120
  %848 = vst.msk [vmem:[#allocation2] sm:$0xff] %vm847, %v783
  %849 = vst.msk [vmem:[#allocation2 + $0x8] sm:$0xff] %vm847, %v784
  %850 = vst.msk [vmem:[#allocation2 + $0x10] sm:$0xff] %vm847, %v785
  %851 = vst.msk [vmem:[#allocation2 + $0x18] sm:$0xff] %vm847, %v786
  %852 = vst.msk [vmem:[#allocation2 + $0x20] sm:$0xff] %vm847, %v787
  %853 = vst.msk [vmem:[#allocation2 + $0x28] sm:$0xff] %vm847, %v788
  %854 = vst.msk [vmem:[#allocation2 + $0x30] sm:$0xff] %vm847, %v789
  %855 = vst.msk [vmem:[#allocation2 + $0x38] sm:$0xff] %vm847, %v790
  %856 = vst.msk [vmem:[#allocation2 + $0x40] sm:$0xff] %vm847, %v791
  %857 = vst.msk [vmem:[#allocation2 + $0x48] sm:$0xff] %vm847, %v792
  %858 = vst.msk [vmem:[#allocation2 + $0x50] sm:$0xff] %vm847, %v793
  %859 = vst.msk [vmem:[#allocation2 + $0x58] sm:$0xff] %vm847, %v794
  %860 = vst.msk [vmem:[#allocation2 + $0x60] sm:$0xff] %vm847, %v795
  %861 = vst.msk [vmem:[#allocation2 + $0x68] sm:$0xff] %vm847, %v796
  %862 = vst.msk [vmem:[#allocation2 + $0x70] sm:$0xff] %vm847, %v797
  %863 = vst.msk [vmem:[#allocation2 + $0x78] sm:$0xff] %vm847, %v798
  %864 = vst.msk [vmem:[#allocation2 + $0x80] sm:$0xff] %vm847, %v799
  %865 = vst.msk [vmem:[#allocation2 + $0x88] sm:$0xff] %vm847, %v800
  %866 = vst.msk [vmem:[#allocation2 + $0x90] sm:$0xff] %vm847, %v801
  %867 = vst.msk [vmem:[#allocation2 + $0x98] sm:$0xff] %vm847, %v802
  %868 = vst.msk [vmem:[#allocation2 + $0xa0] sm:$0xff] %vm847, %v803
  %869 = vst.msk [vmem:[#allocation2 + $0xa8] sm:$0xff] %vm847, %v804
  %870 = vst.msk [vmem:[#allocation2 + $0xb0] sm:$0xff] %vm847, %v805
  %871 = vst.msk [vmem:[#allocation2 + $0xb8] sm:$0xff] %vm847, %v806
  %872 = vst.msk [vmem:[#allocation2 + $0xc0] sm:$0xff] %vm847, %v807
  %873 = vst.msk [vmem:[#allocation2 + $0xc8] sm:$0xff] %vm847, %v808
  %874 = vst.msk [vmem:[#allocation2 + $0xd0] sm:$0xff] %vm847, %v809
  %875 = vst.msk [vmem:[#allocation2 + $0xd8] sm:$0xff] %vm847, %v810
  %876 = vst.msk [vmem:[#allocation2 + $0xe0] sm:$0xff] %vm847, %v811
  %877 = vst.msk [vmem:[#allocation2 + $0xe8] sm:$0xff] %vm847, %v812
  %878 = vst.msk [vmem:[#allocation2 + $0xf0] sm:$0xff] %vm847, %v813
  %879 = vst.msk [vmem:[#allocation2 + $0xf8] sm:$0xff] %vm847, %v814
  %880 = vst.msk [vmem:[#allocation2 + $0x100] sm:$0xff] %vm847, %v815
  %881 = vst.msk [vmem:[#allocation2 + $0x108] sm:$0xff] %vm847, %v816
  %882 = vst.msk [vmem:[#allocation2 + $0x110] sm:$0xff] %vm847, %v817
  %883 = vst.msk [vmem:[#allocation2 + $0x118] sm:$0xff] %vm847, %v818
  %884 = vst.msk [vmem:[#allocation2 + $0x120] sm:$0xff] %vm847, %v819
  %885 = vst.msk [vmem:[#allocation2 + $0x128] sm:$0xff] %vm847, %v820
  %886 = vst.msk [vmem:[#allocation2 + $0x130] sm:$0xff] %vm847, %v821
  %887 = vst.msk [vmem:[#allocation2 + $0x138] sm:$0xff] %vm847, %v822
  %888 = vst.msk [vmem:[#allocation2 + $0x140] sm:$0xff] %vm847, %v823
  %889 = vst.msk [vmem:[#allocation2 + $0x148] sm:$0xff] %vm847, %v824
  %890 = vst.msk [vmem:[#allocation2 + $0x150] sm:$0xff] %vm847, %v825
  %891 = vst.msk [vmem:[#allocation2 + $0x158] sm:$0xff] %vm847, %v826
  %892 = vst.msk [vmem:[#allocation2 + $0x160] sm:$0xff] %vm847, %v827
  %893 = vst.msk [vmem:[#allocation2 + $0x168] sm:$0xff] %vm847, %v828
  %894 = vst.msk [vmem:[#allocation2 + $0x170] sm:$0xff] %vm847, %v829
  %895 = vst.msk [vmem:[#allocation2 + $0x178] sm:$0xff] %vm847, %v830
  %896 = vst.msk [vmem:[#allocation2 + $0x180] sm:$0xff] %vm847, %v831
  %897 = vst.msk [vmem:[#allocation2 + $0x188] sm:$0xff] %vm847, %v832
  %898 = vst.msk [vmem:[#allocation2 + $0x190] sm:$0xff] %vm847, %v833
  %899 = vst.msk [vmem:[#allocation2 + $0x198] sm:$0xff] %vm847, %v834
  %900 = vst.msk [vmem:[#allocation2 + $0x1a0] sm:$0xff] %vm847, %v835
  %901 = vst.msk [vmem:[#allocation2 + $0x1a8] sm:$0xff] %vm847, %v836
  %902 = vst.msk [vmem:[#allocation2 + $0x1b0] sm:$0xff] %vm847, %v837
  %903 = vst.msk [vmem:[#allocation2 + $0x1b8] sm:$0xff] %vm847, %v838
  %904 = vst.msk [vmem:[#allocation2 + $0x1c0] sm:$0xff] %vm847, %v839
  %905 = vst.msk [vmem:[#allocation2 + $0x1c8] sm:$0xff] %vm847, %v840
  %906 = vst.msk [vmem:[#allocation2 + $0x1d0] sm:$0xff] %vm847, %v841
  %907 = vst.msk [vmem:[#allocation2 + $0x1d8] sm:$0xff] %vm847, %v842
  %908 = vst.msk [vmem:[#allocation2 + $0x1e0] sm:$0xff] %vm847, %v843
  %909 = vst.msk [vmem:[#allocation2 + $0x1e8] sm:$0xff] %vm847, %v844
  %910 = vst.msk [vmem:[#allocation2 + $0x1f0] sm:$0xff] %vm847, %v845
  %911 = vst.msk [vmem:[#allocation2 + $0x1f8] sm:$0xff] %vm847, %v846
  // Predicated region
  $region22: #{tpu_custom_call.1} parent=0 // pred_check
    %p912 = pneg %p18
  $region23: #{tpu_custom_call.1} parent=0 // pred_check_branch
    %914 = sbr.rel (%p912) target = $region25
  $region24: #{tpu_custom_call.1} parent=0 // pred_region
    %v915 = vld [vmem:[#allocation2] sm:$0xff]
    %v916 = vld [vmem:[#allocation2 + $0x8] sm:$0xff]
    %v917 = vld [vmem:[#allocation2 + $0x10] sm:$0xff]
    %v918 = vld [vmem:[#allocation2 + $0x18] sm:$0xff]
    %v919 = vld [vmem:[#allocation2 + $0x20] sm:$0xff]
    %v920 = vld [vmem:[#allocation2 + $0x28] sm:$0xff]
    %v921 = vld [vmem:[#allocation2 + $0x30] sm:$0xff]
    %v922 = vld [vmem:[#allocation2 + $0x38] sm:$0xff]
    %v923 = vld [vmem:[#allocation2 + $0x40] sm:$0xff]
    %v924 = vld [vmem:[#allocation2 + $0x48] sm:$0xff]
    %v925 = vld [vmem:[#allocation2 + $0x50] sm:$0xff]
    %v926 = vld [vmem:[#allocation2 + $0x58] sm:$0xff]
    %v927 = vld [vmem:[#allocation2 + $0x60] sm:$0xff]
    %v928 = vld [vmem:[#allocation2 + $0x68] sm:$0xff]
    %v929 = vld [vmem:[#allocation2 + $0x70] sm:$0xff]
    %v930 = vld [vmem:[#allocation2 + $0x78] sm:$0xff]
    %v931 = vld [vmem:[#allocation2 + $0x80] sm:$0xff]
    %v932 = vld [vmem:[#allocation2 + $0x88] sm:$0xff]
    %v933 = vld [vmem:[#allocation2 + $0x90] sm:$0xff]
    %v934 = vld [vmem:[#allocation2 + $0x98] sm:$0xff]
    %v935 = vld [vmem:[#allocation2 + $0xa0] sm:$0xff]
    %v936 = vld [vmem:[#allocation2 + $0xa8] sm:$0xff]
    %v937 = vld [vmem:[#allocation2 + $0xb0] sm:$0xff]
    %v938 = vld [vmem:[#allocation2 + $0xb8] sm:$0xff]
    %v939 = vld [vmem:[#allocation2 + $0xc0] sm:$0xff]
    %v940 = vld [vmem:[#allocation2 + $0xc8] sm:$0xff]
    %v941 = vld [vmem:[#allocation2 + $0xd0] sm:$0xff]
    %v942 = vld [vmem:[#allocation2 + $0xd8] sm:$0xff]
    %v943 = vld [vmem:[#allocation2 + $0xe0] sm:$0xff]
    %v944 = vld [vmem:[#allocation2 + $0xe8] sm:$0xff]
    %v945 = vld [vmem:[#allocation2 + $0xf0] sm:$0xff]
    %v946 = vld [vmem:[#allocation2 + $0xf8] sm:$0xff]
    %v947 = vld [vmem:[#allocation2 + $0x100] sm:$0xff]
    %v948 = vld [vmem:[#allocation2 + $0x108] sm:$0xff]
    %v949 = vld [vmem:[#allocation2 + $0x110] sm:$0xff]
    %v950 = vld [vmem:[#allocation2 + $0x118] sm:$0xff]
    %v951 = vld [vmem:[#allocation2 + $0x120] sm:$0xff]
    %v952 = vld [vmem:[#allocation2 + $0x128] sm:$0xff]
    %v953 = vld [vmem:[#allocation2 + $0x130] sm:$0xff]
    %v954 = vld [vmem:[#allocation2 + $0x138] sm:$0xff]
    %v955 = vld [vmem:[#allocation2 + $0x140] sm:$0xff]
    %v956 = vld [vmem:[#allocation2 + $0x148] sm:$0xff]
    %v957 = vld [vmem:[#allocation2 + $0x150] sm:$0xff]
    %v958 = vld [vmem:[#allocation2 + $0x158] sm:$0xff]
    %v959 = vld [vmem:[#allocation2 + $0x160] sm:$0xff]
    %v960 = vld [vmem:[#allocation2 + $0x168] sm:$0xff]
    %v961 = vld [vmem:[#allocation2 + $0x170] sm:$0xff]
    %v962 = vld [vmem:[#allocation2 + $0x178] sm:$0xff]
    %v963 = vld [vmem:[#allocation2 + $0x180] sm:$0xff]
    %v964 = vld [vmem:[#allocation2 + $0x188] sm:$0xff]
    %v965 = vld [vmem:[#allocation2 + $0x190] sm:$0xff]
    %v966 = vld [vmem:[#allocation2 + $0x198] sm:$0xff]
    %v967 = vld [vmem:[#allocation2 + $0x1a0] sm:$0xff]
    %v968 = vld [vmem:[#allocation2 + $0x1a8] sm:$0xff]
    %v969 = vld [vmem:[#allocation2 + $0x1b0] sm:$0xff]
    %v970 = vld [vmem:[#allocation2 + $0x1b8] sm:$0xff]
    %v971 = vld [vmem:[#allocation2 + $0x1c0] sm:$0xff]
    %v972 = vld [vmem:[#allocation2 + $0x1c8] sm:$0xff]
    %v973 = vld [vmem:[#allocation2 + $0x1d0] sm:$0xff]
    %v974 = vld [vmem:[#allocation2 + $0x1d8] sm:$0xff]
    %v975 = vld [vmem:[#allocation2 + $0x1e0] sm:$0xff]
    %v976 = vld [vmem:[#allocation2 + $0x1e8] sm:$0xff]
    %v977 = vld [vmem:[#allocation2 + $0x1f0] sm:$0xff]
    %v978 = vld [vmem:[#allocation2 + $0x1f8] sm:$0xff]
    %v979 = vld [vmem:[%s2] sm:$0x1]
    %v981 = vlaneseq
    %v982 = vshrl.u32 %v981, 7
    %v983 = vsub.s32 0, %v982
    %v984 = vrot.slane %v979, %v983
    %v986 = vmul.f32 %v915, %v984
    %v987 = vmul.f32 %v916, %v984
    %v988 = vmul.f32 %v917, %v984
    %v989 = vmul.f32 %v918, %v984
    %v990 = vmul.f32 %v919, %v984
    %v991 = vmul.f32 %v920, %v984
    %v992 = vmul.f32 %v921, %v984
    %v993 = vmul.f32 %v922, %v984
    %v994 = vmul.f32 %v923, %v984
    %v995 = vmul.f32 %v924, %v984
    %v996 = vmul.f32 %v925, %v984
    %v997 = vmul.f32 %v926, %v984
    %v998 = vmul.f32 %v927, %v984
    %v999 = vmul.f32 %v928, %v984
    %v1000 = vmul.f32 %v929, %v984
    %v1001 = vmul.f32 %v930, %v984
    %v1002 = vmul.f32 %v931, %v984
    %v1003 = vmul.f32 %v932, %v984
    %v1004 = vmul.f32 %v933, %v984
    %v1005 = vmul.f32 %v934, %v984
    %v1006 = vmul.f32 %v935, %v984
    %v1007 = vmul.f32 %v936, %v984
    %v1008 = vmul.f32 %v937, %v984
    %v1009 = vmul.f32 %v938, %v984
    %v1010 = vmul.f32 %v939, %v984
    %v1011 = vmul.f32 %v940, %v984
    %v1012 = vmul.f32 %v941, %v984
    %v1013 = vmul.f32 %v942, %v984
    %v1014 = vmul.f32 %v943, %v984
    %v1015 = vmul.f32 %v944, %v984
    %v1016 = vmul.f32 %v945, %v984
    %v1017 = vmul.f32 %v946, %v984
    %v1018 = vmul.f32 %v947, %v984
    %v1019 = vmul.f32 %v948, %v984
    %v1020 = vmul.f32 %v949, %v984
    %v1021 = vmul.f32 %v950, %v984
    %v1022 = vmul.f32 %v951, %v984
    %v1023 = vmul.f32 %v952, %v984
    %v1024 = vmul.f32 %v953, %v984
    %v1025 = vmul.f32 %v954, %v984
    %v1026 = vmul.f32 %v955, %v984
    %v1027 = vmul.f32 %v956, %v984
    %v1028 = vmul.f32 %v957, %v984
    %v1029 = vmul.f32 %v958, %v984
    %v1030 = vmul.f32 %v959, %v984
    %v1031 = vmul.f32 %v960, %v984
    %v1032 = vmul.f32 %v961, %v984
    %v1033 = vmul.f32 %v962, %v984
    %v1034 = vmul.f32 %v963, %v984
    %v1035 = vmul.f32 %v964, %v984
    %v1036 = vmul.f32 %v965, %v984
    %v1037 = vmul.f32 %v966, %v984
    %v1038 = vmul.f32 %v967, %v984
    %v1039 = vmul.f32 %v968, %v984
    %v1040 = vmul.f32 %v969, %v984
    %v1041 = vmul.f32 %v970, %v984
    %v1042 = vmul.f32 %v971, %v984
    %v1043 = vmul.f32 %v972, %v984
    %v1044 = vmul.f32 %v973, %v984
    %v1045 = vmul.f32 %v974, %v984
    %v1046 = vmul.f32 %v975, %v984
    %v1047 = vmul.f32 %v976, %v984
    %v1048 = vmul.f32 %v977, %v984
    %v1049 = vmul.f32 %v978, %v984
    %v1050 = vld [vmem:[%s3] sm:$0x1]
    %v1052 = vlaneseq
    %v1053 = vshrl.u32 %v1052, 7
    %v1054 = vsub.s32 0, %v1053
    %v1055 = vrot.slane %v1050, %v1054
    %v1057 = vadd.f32 %v986, %v1055
    %v1058 = vadd.f32 %v987, %v1055
    %v1059 = vadd.f32 %v988, %v1055
    %v1060 = vadd.f32 %v989, %v1055
    %v1061 = vadd.f32 %v990, %v1055
    %v1062 = vadd.f32 %v991, %v1055
    %v1063 = vadd.f32 %v992, %v1055
    %v1064 = vadd.f32 %v993, %v1055
    %v1065 = vadd.f32 %v994, %v1055
    %v1066 = vadd.f32 %v995, %v1055
    %v1067 = vadd.f32 %v996, %v1055
    %v1068 = vadd.f32 %v997, %v1055
    %v1069 = vadd.f32 %v998, %v1055
    %v1070 = vadd.f32 %v999, %v1055
    %v1071 = vadd.f32 %v1000, %v1055
    %v1072 = vadd.f32 %v1001, %v1055
    %v1073 = vadd.f32 %v1002, %v1055
    %v1074 = vadd.f32 %v1003, %v1055
    %v1075 = vadd.f32 %v1004, %v1055
    %v1076 = vadd.f32 %v1005, %v1055
    %v1077 = vadd.f32 %v1006, %v1055
    %v1078 = vadd.f32 %v1007, %v1055
    %v1079 = vadd.f32 %v1008, %v1055
    %v1080 = vadd.f32 %v1009, %v1055
    %v1081 = vadd.f32 %v1010, %v1055
    %v1082 = vadd.f32 %v1011, %v1055
    %v1083 = vadd.f32 %v1012, %v1055
    %v1084 = vadd.f32 %v1013, %v1055
    %v1085 = vadd.f32 %v1014, %v1055
    %v1086 = vadd.f32 %v1015, %v1055
    %v1087 = vadd.f32 %v1016, %v1055
    %v1088 = vadd.f32 %v1017, %v1055
    %v1089 = vadd.f32 %v1018, %v1055
    %v1090 = vadd.f32 %v1019, %v1055
    %v1091 = vadd.f32 %v1020, %v1055
    %v1092 = vadd.f32 %v1021, %v1055
    %v1093 = vadd.f32 %v1022, %v1055
    %v1094 = vadd.f32 %v1023, %v1055
    %v1095 = vadd.f32 %v1024, %v1055
    %v1096 = vadd.f32 %v1025, %v1055
    %v1097 = vadd.f32 %v1026, %v1055
    %v1098 = vadd.f32 %v1027, %v1055
    %v1099 = vadd.f32 %v1028, %v1055
    %v1100 = vadd.f32 %v1029, %v1055
    %v1101 = vadd.f32 %v1030, %v1055
    %v1102 = vadd.f32 %v1031, %v1055
    %v1103 = vadd.f32 %v1032, %v1055
    %v1104 = vadd.f32 %v1033, %v1055
    %v1105 = vadd.f32 %v1034, %v1055
    %v1106 = vadd.f32 %v1035, %v1055
    %v1107 = vadd.f32 %v1036, %v1055
    %v1108 = vadd.f32 %v1037, %v1055
    %v1109 = vadd.f32 %v1038, %v1055
    %v1110 = vadd.f32 %v1039, %v1055
    %v1111 = vadd.f32 %v1040, %v1055
    %v1112 = vadd.f32 %v1041, %v1055
    %v1113 = vadd.f32 %v1042, %v1055
    %v1114 = vadd.f32 %v1043, %v1055
    %v1115 = vadd.f32 %v1044, %v1055
    %v1116 = vadd.f32 %v1045, %v1055
    %v1117 = vadd.f32 %v1046, %v1055
    %v1118 = vadd.f32 %v1047, %v1055
    %v1119 = vadd.f32 %v1048, %v1055
    %v1120 = vadd.f32 %v1049, %v1055
    %v1121 = vmax.f32 %v1057, 0.0
    %v1122 = vmax.f32 %v1058, 0.0
    %v1123 = vmax.f32 %v1059, 0.0
    %v1124 = vmax.f32 %v1060, 0.0
    %v1125 = vmax.f32 %v1061, 0.0
    %v1126 = vmax.f32 %v1062, 0.0
    %v1127 = vmax.f32 %v1063, 0.0
    %v1128 = vmax.f32 %v1064, 0.0
    %v1129 = vmax.f32 %v1065, 0.0
    %v1130 = vmax.f32 %v1066, 0.0
    %v1131 = vmax.f32 %v1067, 0.0
    %v1132 = vmax.f32 %v1068, 0.0
    %v1133 = vmax.f32 %v1069, 0.0
    %v1134 = vmax.f32 %v1070, 0.0
    %v1135 = vmax.f32 %v1071, 0.0
    %v1136 = vmax.f32 %v1072, 0.0
    %v1137 = vmax.f32 %v1073, 0.0
    %v1138 = vmax.f32 %v1074, 0.0
    %v1139 = vmax.f32 %v1075, 0.0
    %v1140 = vmax.f32 %v1076, 0.0
    %v1141 = vmax.f32 %v1077, 0.0
    %v1142 = vmax.f32 %v1078, 0.0
    %v1143 = vmax.f32 %v1079, 0.0
    %v1144 = vmax.f32 %v1080, 0.0
    %v1145 = vmax.f32 %v1081, 0.0
    %v1146 = vmax.f32 %v1082, 0.0
    %v1147 = vmax.f32 %v1083, 0.0
    %v1148 = vmax.f32 %v1084, 0.0
    %v1149 = vmax.f32 %v1085, 0.0
    %v1150 = vmax.f32 %v1086, 0.0
    %v1151 = vmax.f32 %v1087, 0.0
    %v1152 = vmax.f32 %v1088, 0.0
    %v1153 = vmax.f32 %v1089, 0.0
    %v1154 = vmax.f32 %v1090, 0.0
    %v1155 = vmax.f32 %v1091, 0.0
    %v1156 = vmax.f32 %v1092, 0.0
    %v1157 = vmax.f32 %v1093, 0.0
    %v1158 = vmax.f32 %v1094, 0.0
    %v1159 = vmax.f32 %v1095, 0.0
    %v1160 = vmax.f32 %v1096, 0.0
    %v1161 = vmax.f32 %v1097, 0.0
    %v1162 = vmax.f32 %v1098, 0.0
    %v1163 = vmax.f32 %v1099, 0.0
    %v1164 = vmax.f32 %v1100, 0.0
    %v1165 = vmax.f32 %v1101, 0.0
    %v1166 = vmax.f32 %v1102, 0.0
    %v1167 = vmax.f32 %v1103, 0.0
    %v1168 = vmax.f32 %v1104, 0.0
    %v1169 = vmax.f32 %v1105, 0.0
    %v1170 = vmax.f32 %v1106, 0.0
    %v1171 = vmax.f32 %v1107, 0.0
    %v1172 = vmax.f32 %v1108, 0.0
    %v1173 = vmax.f32 %v1109, 0.0
    %v1174 = vmax.f32 %v1110, 0.0
    %v1175 = vmax.f32 %v1111, 0.0
    %v1176 = vmax.f32 %v1112, 0.0
    %v1177 = vmax.f32 %v1113, 0.0
    %v1178 = vmax.f32 %v1114, 0.0
    %v1179 = vmax.f32 %v1115, 0.0
    %v1180 = vmax.f32 %v1116, 0.0
    %v1181 = vmax.f32 %v1117, 0.0
    %v1182 = vmax.f32 %v1118, 0.0
    %v1183 = vmax.f32 %v1119, 0.0
    %v1184 = vmax.f32 %v1120, 0.0
    %v1185 = vmin.f32 %v1121, 6.0
    %v1186 = vmin.f32 %v1122, 6.0
    %v1187 = vmin.f32 %v1123, 6.0
    %v1188 = vmin.f32 %v1124, 6.0
    %v1189 = vmin.f32 %v1125, 6.0
    %v1190 = vmin.f32 %v1126, 6.0
    %v1191 = vmin.f32 %v1127, 6.0
    %v1192 = vmin.f32 %v1128, 6.0
    %v1193 = vmin.f32 %v1129, 6.0
    %v1194 = vmin.f32 %v1130, 6.0
    %v1195 = vmin.f32 %v1131, 6.0
    %v1196 = vmin.f32 %v1132, 6.0
    %v1197 = vmin.f32 %v1133, 6.0
    %v1198 = vmin.f32 %v1134, 6.0
    %v1199 = vmin.f32 %v1135, 6.0
    %v1200 = vmin.f32 %v1136, 6.0
    %v1201 = vmin.f32 %v1137, 6.0
    %v1202 = vmin.f32 %v1138, 6.0
    %v1203 = vmin.f32 %v1139, 6.0
    %v1204 = vmin.f32 %v1140, 6.0
    %v1205 = vmin.f32 %v1141, 6.0
    %v1206 = vmin.f32 %v1142, 6.0
    %v1207 = vmin.f32 %v1143, 6.0
    %v1208 = vmin.f32 %v1144, 6.0
    %v1209 = vmin.f32 %v1145, 6.0
    %v1210 = vmin.f32 %v1146, 6.0
    %v1211 = vmin.f32 %v1147, 6.0
    %v1212 = vmin.f32 %v1148, 6.0
    %v1213 = vmin.f32 %v1149, 6.0
    %v1214 = vmin.f32 %v1150, 6.0
    %v1215 = vmin.f32 %v1151, 6.0
    %v1216 = vmin.f32 %v1152, 6.0
    %v1217 = vmin.f32 %v1153, 6.0
    %v1218 = vmin.f32 %v1154, 6.0
    %v1219 = vmin.f32 %v1155, 6.0
    %v1220 = vmin.f32 %v1156, 6.0
    %v1221 = vmin.f32 %v1157, 6.0
    %v1222 = vmin.f32 %v1158, 6.0
    %v1223 = vmin.f32 %v1159, 6.0
    %v1224 = vmin.f32 %v1160, 6.0
    %v1225 = vmin.f32 %v1161, 6.0
    %v1226 = vmin.f32 %v1162, 6.0
    %v1227 = vmin.f32 %v1163, 6.0
    %v1228 = vmin.f32 %v1164, 6.0
    %v1229 = vmin.f32 %v1165, 6.0
    %v1230 = vmin.f32 %v1166, 6.0
    %v1231 = vmin.f32 %v1167, 6.0
    %v1232 = vmin.f32 %v1168, 6.0
    %v1233 = vmin.f32 %v1169, 6.0
    %v1234 = vmin.f32 %v1170, 6.0
    %v1235 = vmin.f32 %v1171, 6.0
    %v1236 = vmin.f32 %v1172, 6.0
    %v1237 = vmin.f32 %v1173, 6.0
    %v1238 = vmin.f32 %v1174, 6.0
    %v1239 = vmin.f32 %v1175, 6.0
    %v1240 = vmin.f32 %v1176, 6.0
    %v1241 = vmin.f32 %v1177, 6.0
    %v1242 = vmin.f32 %v1178, 6.0
    %v1243 = vmin.f32 %v1179, 6.0
    %v1244 = vmin.f32 %v1180, 6.0
    %v1245 = vmin.f32 %v1181, 6.0
    %v1246 = vmin.f32 %v1182, 6.0
    %v1247 = vmin.f32 %v1183, 6.0
    %v1248 = vmin.f32 %v1184, 6.0
    %v1249 = vpack.c.bf16 %v1186, %v1185
    %v1250 = vpack.c.bf16 %v1188, %v1187
    %v1251 = vpack.c.bf16 %v1190, %v1189
    %v1252 = vpack.c.bf16 %v1192, %v1191
    %v1253 = vpack.c.bf16 %v1194, %v1193
    %v1254 = vpack.c.bf16 %v1196, %v1195
    %v1255 = vpack.c.bf16 %v1198, %v1197
    %v1256 = vpack.c.bf16 %v1200, %v1199
    %v1257 = vpack.c.bf16 %v1202, %v1201
    %v1258 = vpack.c.bf16 %v1204, %v1203
    %v1259 = vpack.c.bf16 %v1206, %v1205
    %v1260 = vpack.c.bf16 %v1208, %v1207
    %v1261 = vpack.c.bf16 %v1210, %v1209
    %v1262 = vpack.c.bf16 %v1212, %v1211
    %v1263 = vpack.c.bf16 %v1214, %v1213
    %v1264 = vpack.c.bf16 %v1216, %v1215
    %v1265 = vpack.c.bf16 %v1218, %v1217
    %v1266 = vpack.c.bf16 %v1220, %v1219
    %v1267 = vpack.c.bf16 %v1222, %v1221
    %v1268 = vpack.c.bf16 %v1224, %v1223
    %v1269 = vpack.c.bf16 %v1226, %v1225
    %v1270 = vpack.c.bf16 %v1228, %v1227
    %v1271 = vpack.c.bf16 %v1230, %v1229
    %v1272 = vpack.c.bf16 %v1232, %v1231
    %v1273 = vpack.c.bf16 %v1234, %v1233
    %v1274 = vpack.c.bf16 %v1236, %v1235
    %v1275 = vpack.c.bf16 %v1238, %v1237
    %v1276 = vpack.c.bf16 %v1240, %v1239
    %v1277 = vpack.c.bf16 %v1242, %v1241
    %v1278 = vpack.c.bf16 %v1244, %v1243
    %v1279 = vpack.c.bf16 %v1246, %v1245
    %v1280 = vpack.c.bf16 %v1248, %v1247
    %v1313 = vunpack.c.l.b16 %v1249
    %v1314 = vunpack.c.h.b16 %v1249
    %v1315 = vunpack.c.l.b16 %v1250
    %v1316 = vunpack.c.h.b16 %v1250
    %v1317 = vunpack.c.l.b16 %v1251
    %v1318 = vunpack.c.h.b16 %v1251
    %v1319 = vunpack.c.l.b16 %v1252
    %v1320 = vunpack.c.h.b16 %v1252
    %v1321 = vunpack.c.l.b16 %v1253
    %v1322 = vunpack.c.h.b16 %v1253
    %v1323 = vunpack.c.l.b16 %v1254
    %v1324 = vunpack.c.h.b16 %v1254
    %v1325 = vunpack.c.l.b16 %v1255
    %v1326 = vunpack.c.h.b16 %v1255
    %v1327 = vunpack.c.l.b16 %v1256
    %v1328 = vunpack.c.h.b16 %v1256
    %v1329 = vunpack.c.l.b16 %v1257
    %v1330 = vunpack.c.h.b16 %v1257
    %v1331 = vunpack.c.l.b16 %v1258
    %v1332 = vunpack.c.h.b16 %v1258
    %v1333 = vunpack.c.l.b16 %v1259
    %v1334 = vunpack.c.h.b16 %v1259
    %v1335 = vunpack.c.l.b16 %v1260
    %v1336 = vunpack.c.h.b16 %v1260
    %v1337 = vunpack.c.l.b16 %v1261
    %v1338 = vunpack.c.h.b16 %v1261
    %v1339 = vunpack.c.l.b16 %v1262
    %v1340 = vunpack.c.h.b16 %v1262
    %v1341 = vunpack.c.l.b16 %v1263
    %v1342 = vunpack.c.h.b16 %v1263
    %v1343 = vunpack.c.l.b16 %v1264
    %v1344 = vunpack.c.h.b16 %v1264
    %v1345 = vunpack.c.l.b16 %v1265
    %v1346 = vunpack.c.h.b16 %v1265
    %v1347 = vunpack.c.l.b16 %v1266
    %v1348 = vunpack.c.h.b16 %v1266
    %v1349 = vunpack.c.l.b16 %v1267
    %v1350 = vunpack.c.h.b16 %v1267
    %v1351 = vunpack.c.l.b16 %v1268
    %v1352 = vunpack.c.h.b16 %v1268
    %v1353 = vunpack.c.l.b16 %v1269
    %v1354 = vunpack.c.h.b16 %v1269
    %v1355 = vunpack.c.l.b16 %v1270
    %v1356 = vunpack.c.h.b16 %v1270
    %v1357 = vunpack.c.l.b16 %v1271
    %v1358 = vunpack.c.h.b16 %v1271
    %v1359 = vunpack.c.l.b16 %v1272
    %v1360 = vunpack.c.h.b16 %v1272
    %v1361 = vunpack.c.l.b16 %v1273
    %v1362 = vunpack.c.h.b16 %v1273
    %v1363 = vunpack.c.l.b16 %v1274
    %v1364 = vunpack.c.h.b16 %v1274
    %v1365 = vunpack.c.l.b16 %v1275
    %v1366 = vunpack.c.h.b16 %v1275
    %v1367 = vunpack.c.l.b16 %v1276
    %v1368 = vunpack.c.h.b16 %v1276
    %v1369 = vunpack.c.l.b16 %v1277
    %v1370 = vunpack.c.h.b16 %v1277
    %v1371 = vunpack.c.l.b16 %v1278
    %v1372 = vunpack.c.h.b16 %v1278
    %v1373 = vunpack.c.l.b16 %v1279
    %v1374 = vunpack.c.h.b16 %v1279
    %v1375 = vunpack.c.l.b16 %v1280
    %v1376 = vunpack.c.h.b16 %v1280
    %v1377 = vpack.c.b16 %v1313, %v1313
    %v1378 = vpack.c.b16 %v1314, %v1314
    %v1379 = vpack.c.b16 %v1315, %v1315
    %v1380 = vpack.c.b16 %v1316, %v1316
    %v1381 = vpack.c.b16 %v1317, %v1317
    %v1382 = vpack.c.b16 %v1318, %v1318
    %v1383 = vpack.c.b16 %v1319, %v1319
    %v1384 = vpack.c.b16 %v1320, %v1320
    %v1385 = vpack.c.b16 %v1321, %v1321
    %v1386 = vpack.c.b16 %v1322, %v1322
    %v1387 = vpack.c.b16 %v1323, %v1323
    %v1388 = vpack.c.b16 %v1324, %v1324
    %v1389 = vpack.c.b16 %v1325, %v1325
    %v1390 = vpack.c.b16 %v1326, %v1326
    %v1391 = vpack.c.b16 %v1327, %v1327
    %v1392 = vpack.c.b16 %v1328, %v1328
    %v1393 = vpack.c.b16 %v1329, %v1329
    %v1394 = vpack.c.b16 %v1330, %v1330
    %v1395 = vpack.c.b16 %v1331, %v1331
    %v1396 = vpack.c.b16 %v1332, %v1332
    %v1397 = vpack.c.b16 %v1333, %v1333
    %v1398 = vpack.c.b16 %v1334, %v1334
    %v1399 = vpack.c.b16 %v1335, %v1335
    %v1400 = vpack.c.b16 %v1336, %v1336
    %v1401 = vpack.c.b16 %v1337, %v1337
    %v1402 = vpack.c.b16 %v1338, %v1338
    %v1403 = vpack.c.b16 %v1339, %v1339
    %v1404 = vpack.c.b16 %v1340, %v1340
    %v1405 = vpack.c.b16 %v1341, %v1341
    %v1406 = vpack.c.b16 %v1342, %v1342
    %v1407 = vpack.c.b16 %v1343, %v1343
    %v1408 = vpack.c.b16 %v1344, %v1344
    %v1409 = vpack.c.b16 %v1345, %v1345
    %v1410 = vpack.c.b16 %v1346, %v1346
    %v1411 = vpack.c.b16 %v1347, %v1347
    %v1412 = vpack.c.b16 %v1348, %v1348
    %v1413 = vpack.c.b16 %v1349, %v1349
    %v1414 = vpack.c.b16 %v1350, %v1350
    %v1415 = vpack.c.b16 %v1351, %v1351
    %v1416 = vpack.c.b16 %v1352, %v1352
    %v1417 = vpack.c.b16 %v1353, %v1353
    %v1418 = vpack.c.b16 %v1354, %v1354
    %v1419 = vpack.c.b16 %v1355, %v1355
    %v1420 = vpack.c.b16 %v1356, %v1356
    %v1421 = vpack.c.b16 %v1357, %v1357
    %v1422 = vpack.c.b16 %v1358, %v1358
    %v1423 = vpack.c.b16 %v1359, %v1359
    %v1424 = vpack.c.b16 %v1360, %v1360
    %v1425 = vpack.c.b16 %v1361, %v1361
    %v1426 = vpack.c.b16 %v1362, %v1362
    %v1427 = vpack.c.b16 %v1363, %v1363
    %v1428 = vpack.c.b16 %v1364, %v1364
    %v1429 = vpack.c.b16 %v1365, %v1365
    %v1430 = vpack.c.b16 %v1366, %v1366
    %v1431 = vpack.c.b16 %v1367, %v1367
    %v1432 = vpack.c.b16 %v1368, %v1368
    %v1433 = vpack.c.b16 %v1369, %v1369
    %v1434 = vpack.c.b16 %v1370, %v1370
    %v1435 = vpack.c.b16 %v1371, %v1371
    %v1436 = vpack.c.b16 %v1372, %v1372
    %v1437 = vpack.c.b16 %v1373, %v1373
    %v1438 = vpack.c.b16 %v1374, %v1374
    %v1439 = vpack.c.b16 %v1375, %v1375
    %v1440 = vpack.c.b16 %v1376, %v1376
    %vm1505 = vcmask 257024
    %1506 = vst.msk [vmem:[%s4] sm:$0xf] %vm1505, %v1377
    %1507 = vst.msk [vmem:[%s4 + $0x4] sm:$0xf] %vm1505, %v1378
    %1508 = vst.msk [vmem:[%s4 + $0x8] sm:$0xf] %vm1505, %v1379
    %1509 = vst.msk [vmem:[%s4 + $0xc] sm:$0xf] %vm1505, %v1380
    %1510 = vst.msk [vmem:[%s4 + $0x10] sm:$0xf] %vm1505, %v1381
    %1511 = vst.msk [vmem:[%s4 + $0x14] sm:$0xf] %vm1505, %v1382
    %1512 = vst.msk [vmem:[%s4 + $0x18] sm:$0xf] %vm1505, %v1383
    %1513 = vst.msk [vmem:[%s4 + $0x1c] sm:$0xf] %vm1505, %v1384
    %1514 = vst.msk [vmem:[%s4 + $0x20] sm:$0xf] %vm1505, %v1385
    %1515 = vst.msk [vmem:[%s4 + $0x24] sm:$0xf] %vm1505, %v1386
    %1516 = vst.msk [vmem:[%s4 + $0x28] sm:$0xf] %vm1505, %v1387
    %1517 = vst.msk [vmem:[%s4 + $0x2c] sm:$0xf] %vm1505, %v1388
    %1518 = vst.msk [vmem:[%s4 + $0x30] sm:$0xf] %vm1505, %v1389
    %1519 = vst.msk [vmem:[%s4 + $0x34] sm:$0xf] %vm1505, %v1390
    %1520 = vst.msk [vmem:[%s4 + $0x38] sm:$0xf] %vm1505, %v1391
    %1521 = vst.msk [vmem:[%s4 + $0x3c] sm:$0xf] %vm1505, %v1392
    %1522 = vst.msk [vmem:[%s4 + $0x40] sm:$0xf] %vm1505, %v1393
    %1523 = vst.msk [vmem:[%s4 + $0x44] sm:$0xf] %vm1505, %v1394
    %1524 = vst.msk [vmem:[%s4 + $0x48] sm:$0xf] %vm1505, %v1395
    %1525 = vst.msk [vmem:[%s4 + $0x4c] sm:$0xf] %vm1505, %v1396
    %1526 = vst.msk [vmem:[%s4 + $0x50] sm:$0xf] %vm1505, %v1397
    %1527 = vst.msk [vmem:[%s4 + $0x54] sm:$0xf] %vm1505, %v1398
    %1528 = vst.msk [vmem:[%s4 + $0x58] sm:$0xf] %vm1505, %v1399
    %1529 = vst.msk [vmem:[%s4 + $0x5c] sm:$0xf] %vm1505, %v1400
    %1530 = vst.msk [vmem:[%s4 + $0x60] sm:$0xf] %vm1505, %v1401
    %1531 = vst.msk [vmem:[%s4 + $0x64] sm:$0xf] %vm1505, %v1402
    %1532 = vst.msk [vmem:[%s4 + $0x68] sm:$0xf] %vm1505, %v1403
    %1533 = vst.msk [vmem:[%s4 + $0x6c] sm:$0xf] %vm1505, %v1404
    %1534 = vst.msk [vmem:[%s4 + $0x70] sm:$0xf] %vm1505, %v1405
    %1535 = vst.msk [vmem:[%s4 + $0x74] sm:$0xf] %vm1505, %v1406
    %1536 = vst.msk [vmem:[%s4 + $0x78] sm:$0xf] %vm1505, %v1407
    %1537 = vst.msk [vmem:[%s4 + $0x7c] sm:$0xf] %vm1505, %v1408
    %1538 = vst.msk [vmem:[%s4 + $0x80] sm:$0xf] %vm1505, %v1409
    %1539 = vst.msk [vmem:[%s4 + $0x84] sm:$0xf] %vm1505, %v1410
    %1540 = vst.msk [vmem:[%s4 + $0x88] sm:$0xf] %vm1505, %v1411
    %1541 = vst.msk [vmem:[%s4 + $0x8c] sm:$0xf] %vm1505, %v1412
    %1542 = vst.msk [vmem:[%s4 + $0x90] sm:$0xf] %vm1505, %v1413
    %1543 = vst.msk [vmem:[%s4 + $0x94] sm:$0xf] %vm1505, %v1414
    %1544 = vst.msk [vmem:[%s4 + $0x98] sm:$0xf] %vm1505, %v1415
    %1545 = vst.msk [vmem:[%s4 + $0x9c] sm:$0xf] %vm1505, %v1416
    %1546 = vst.msk [vmem:[%s4 + $0xa0] sm:$0xf] %vm1505, %v1417
    %1547 = vst.msk [vmem:[%s4 + $0xa4] sm:$0xf] %vm1505, %v1418
    %1548 = vst.msk [vmem:[%s4 + $0xa8] sm:$0xf] %vm1505, %v1419
    %1549 = vst.msk [vmem:[%s4 + $0xac] sm:$0xf] %vm1505, %v1420
    %1550 = vst.msk [vmem:[%s4 + $0xb0] sm:$0xf] %vm1505, %v1421
    %1551 = vst.msk [vmem:[%s4 + $0xb4] sm:$0xf] %vm1505, %v1422
    %1552 = vst.msk [vmem:[%s4 + $0xb8] sm:$0xf] %vm1505, %v1423
    %1553 = vst.msk [vmem:[%s4 + $0xbc] sm:$0xf] %vm1505, %v1424
    %1554 = vst.msk [vmem:[%s4 + $0xc0] sm:$0xf] %vm1505, %v1425
    %1555 = vst.msk [vmem:[%s4 + $0xc4] sm:$0xf] %vm1505, %v1426
    %1556 = vst.msk [vmem:[%s4 + $0xc8] sm:$0xf] %vm1505, %v1427
    %1557 = vst.msk [vmem:[%s4 + $0xcc] sm:$0xf] %vm1505, %v1428
    %1558 = vst.msk [vmem:[%s4 + $0xd0] sm:$0xf] %vm1505, %v1429
    %1559 = vst.msk [vmem:[%s4 + $0xd4] sm:$0xf] %vm1505, %v1430
    %1560 = vst.msk [vmem:[%s4 + $0xd8] sm:$0xf] %vm1505, %v1431
    %1561 = vst.msk [vmem:[%s4 + $0xdc] sm:$0xf] %vm1505, %v1432
    %1562 = vst.msk [vmem:[%s4 + $0xe0] sm:$0xf] %vm1505, %v1433
    %1563 = vst.msk [vmem:[%s4 + $0xe4] sm:$0xf] %vm1505, %v1434
    %1564 = vst.msk [vmem:[%s4 + $0xe8] sm:$0xf] %vm1505, %v1435
    %1565 = vst.msk [vmem:[%s4 + $0xec] sm:$0xf] %vm1505, %v1436
    %1566 = vst.msk [vmem:[%s4 + $0xf0] sm:$0xf] %vm1505, %v1437
    %1567 = vst.msk [vmem:[%s4 + $0xf4] sm:$0xf] %vm1505, %v1438
    %1568 = vst.msk [vmem:[%s4 + $0xf8] sm:$0xf] %vm1505, %v1439
    %1569 = vst.msk [vmem:[%s4 + $0xfc] sm:$0xf] %vm1505, %v1440
  $region25: #{tpu_custom_call.1} parent=0 // pred_fallthru
    _
  // Predicated region
  $region26: #{tpu_custom_call.1} parent=0 // pred_check
    _
  $region27: #{tpu_custom_call.1} parent=0 // pred_check_branch
    %1571 = sbr.rel (0) target = $region29
  $region28: #{tpu_custom_call.1} parent=0 // pred_region
    _
  $region29: #{tpu_custom_call.1} parent=0 // pred_fallthru
    _
  // Predicated region
  $region30: #{tpu_custom_call.1} parent=0 // pred_check
    _
  $region31: #{tpu_custom_call.1} parent=0 // pred_check_branch
    %1573 = sbr.rel (0) target = $region33
  $region32: #{tpu_custom_call.1} parent=0 // pred_region
    _
  $region33: #{tpu_custom_call.1} parent=0 // pred_fallthru
    _

</llo_original>
